<compile_context>
chip_gen: v5e
topology: v5e:2x2
jax: 0.10.0
libtpu: 0.0.40
codegen_flags: <defaults>
</compile_context>

<pallas_src>
import functools

import jax
import jax.numpy as jnp
from jax.experimental import pallas as pl
from jax.experimental.pallas import tpu as pltpu


def _round_up(n, m):
    return ((n + m - 1) // m) * m


def _netrnn_kernel(x_ref, w1x_ref, b1_ref, rhs0_ref, rhs1_ref, wo2_ref, bo_ref,
                   out_ref):
    """Full 3-step recurrence for one batch tile, fully resident in VMEM.

    rhs0 = [W1h | Wout_step0], rhs1 = [W1h | Wout_step1]   (hid_pad, hid_pad+128)
    wo2  =        Wout_step2                                (hid_pad, 128)
    Output slab columns: [y0 | y1 | y2 | zeros]  (width 128).
    """
    hid_pad = w1x_ref.shape[1]
    cdt = w1x_ref.dtype

    # Loop-invariant part of fl1 (x @ W1x + b1), computed once, f32 accumulation.
    xwb = jnp.dot(x_ref[...], w1x_ref[...],
                  preferred_element_type=jnp.float32) + b1_ref[...]

    # ---- step 0: latent == 0  =>  h0 = relu(xwb); fused matmul yields
    #      [recurrent pre-act for step 1 | step-0 output contribution]
    h = jnp.maximum(xwb, 0.0).astype(cdt)
    z = jnp.dot(h, rhs0_ref[...], preferred_element_type=jnp.float32)
    acc = z[:, hid_pad:]                       # (tb, 128), cols 0:3 live

    # ---- step 1
    h = jnp.maximum(xwb + z[:, :hid_pad], 0.0).astype(cdt)
    z = jnp.dot(h, rhs1_ref[...], preferred_element_type=jnp.float32)
    acc = acc + z[:, hid_pad:]                 # cols 3:7 live

    # ---- step 2 (last): no further recurrence, only the 128-wide output half.
    h = jnp.maximum(xwb + z[:, :hid_pad], 0.0).astype(cdt)
    acc = acc + jnp.dot(h, wo2_ref[...], preferred_element_type=jnp.float32)

    out_ref[...] = acc + bo_ref[...]           # single unmasked (tb,128) store


@functools.partial(jax.jit, static_argnames=("out2", "out3"))
def netrnn_forward(x, kparams, *, out2, out3):
    """x: (B, input_size) f32.  Returns (y0:(B,out2), y1:(B,out3), y2:(B,out3))."""
    w1x_p, b1_p, rhs0_p, rhs1_p, wo2_p, bo_p = kparams
    batch, in_size = x.shape
    in_pad, hid_pad = w1x_p.shape
    out_pad = wo2_p.shape[1]
    cdt = w1x_p.dtype

    # Batch tiling:
    #   * batch <= 64: one tile, rounded to 16 sublanes (bf16 packing).
    #   * batch  > 64: at least 2 "parallel" tiles (v7x megacore can shard),
    #     capped at 512 rows to amortize per-grid-step overhead while staying
    #     a few MB under every generation's VMEM.
    if batch <= 64:
        tb = _round_up(max(batch, 16), 16)
        bp = tb
    else:
        tb = min(512, _round_up(-(-batch // 2), 16))
        bp = _round_up(batch, tb)

    # Pad x to lane/sublane-aligned shape and cast to the MXU operand dtype.
    # TODO(synk): at very large batch (>=4K) fuse this pad/cast into the
    # kernel's input DMA (allow_input_fusion) to avoid an extra HBM pass.
    xp = jnp.zeros((bp, in_pad), cdt).at[:batch, :in_size].set(x.astype(cdt))

    const = lambda i: (0, 0)   # weights stay resident across batch tiles

    flops = 2 * bp * (in_pad * hid_pad
                      + 2 * hid_pad * (hid_pad + out_pad)
                      + hid_pad * out_pad)
    bytes_accessed = (int(xp.size) * xp.dtype.itemsize
                      + sum(int(a.size) * a.dtype.itemsize for a in kparams)
                      + bp * out_pad * 4)

    out = pl.pallas_call(
        _netrnn_kernel,
        out_shape=jax.ShapeDtypeStruct((bp, out_pad), jnp.float32),
        grid_spec=pltpu.PrefetchScalarGridSpec(
            num_scalar_prefetch=0,
            grid=(bp // tb,),
            in_specs=[
                pl.BlockSpec((tb, in_pad), lambda i: (i, 0)),   # x tile
                pl.BlockSpec(w1x_p.shape, const),
                pl.BlockSpec(b1_p.shape, const),
                pl.BlockSpec(rhs0_p.shape, const),
                pl.BlockSpec(rhs1_p.shape, const),
                pl.BlockSpec(wo2_p.shape, const),
                pl.BlockSpec(bo_p.shape, const),
            ],
            out_specs=pl.BlockSpec((tb, out_pad), lambda i: (i, 0)),
        ),
        compiler_params=pltpu.CompilerParams(
            dimension_semantics=("parallel",),
            vmem_limit_bytes=32 * 1024 * 1024,
        ),
        cost_estimate=pl.CostEstimate(
            flops=flops, transcendentals=0, bytes_accessed=bytes_accessed),
    )(xp, w1x_p, b1_p, rhs0_p, rhs1_p, wo2_p, bo_p)

    # Slice the fused lane-dense slab back to logical output widths.
    y0 = out[:batch, 0:out2]
    y1 = out[:batch, out2:out2 + out3]
    y2 = out[:batch, out2 + out3:out2 + 2 * out3]
    return y0, y1, y2


def init_params(key, input_size, hidden_sizes, output_size):
    """Logical f32 params mimicking nn.Linear's uniform(-1/sqrt(fan_in)) init."""
    latent_size = hidden_sizes
    k = jax.random.split(key, 6)

    def linear(kw, kb, fan_in, fan_out):
        bound = 1.0 / jnp.sqrt(jnp.float32(fan_in))
        w = jax.random.uniform(kw, (fan_in, fan_out), jnp.float32, -bound, bound)
        b = jax.random.uniform(kb, (1, fan_out), jnp.float32, -bound, bound)
        return w, b

    w1, b1 = linear(k[0], k[1], input_size + latent_size, hidden_sizes)
    w1x = w1[:input_size, :]            # (input_size, hidden)
    w1h = w1[input_size:, :]            # (latent_size, hidden)
    w2, b2 = linear(k[2], k[3], hidden_sizes, output_size)
    w3, b3 = linear(k[4], k[5], hidden_sizes, output_size + 1)
    return (w1x, w1h, b1, w2, b2, w3, b3)


def pack_params(params, weight_dtype=jnp.bfloat16):
    """Pad to 128-multiples, build per-step fused RHS, cast weights to bf16.

    Output slab layout (128 lanes): [ y0 (out2) | y1 (out3) | y2 (out3) | 0 ].
    rhs_i = [ W1h | Wout_step_i ]  so each recurrent step is ONE MXU matmul.
    """
    w1x, w1h, b1, w2, b2, w3, b3 = params
    in_size, hid = w1x.shape
    out2, out3 = w2.shape[1], w3.shape[1]
    in_pad = _round_up(in_size, 128)
    hid_pad = _round_up(hid, 128)
    out_pad = 128
    assert out2 + 2 * out3 <= out_pad

    w1x_p = jnp.zeros((in_pad, hid_pad), weight_dtype).at[:in_size, :hid].set(
        w1x.astype(weight_dtype))
    b1_p = jnp.zeros((1, hid_pad), jnp.float32).at[:, :hid].set(b1)
    w1h_p = jnp.zeros((hid_pad, hid_pad), weight_dtype).at[:hid, :hid].set(
        w1h.astype(weight_dtype))

    # Per-step output weights shifted to disjoint lane ranges of one slab.
    wo0 = jnp.zeros((hid_pad, out_pad), weight_dtype).at[
        :hid, 0:out2].set(w2.astype(weight_dtype))
    wo1 = jnp.zeros((hid_pad, out_pad), weight_dtype).at[
        :hid, out2:out2 + out3].set(w3.astype(weight_dtype))
    wo2 = jnp.zeros((hid_pad, out_pad), weight_dtype).at[
        :hid, out2 + out3:out2 + 2 * out3].set(w3.astype(weight_dtype))

    # Combined bias for the fused output slab (padded lanes stay 0).
    bo = jnp.zeros((1, out_pad), jnp.float32)
    bo = bo.at[:, 0:out2].set(b2)
    bo = bo.at[:, out2:out2 + out3].set(b3)
    bo = bo.at[:, out2 + out3:out2 + 2 * out3].set(b3)

    rhs0 = jnp.concatenate([w1h_p, wo0], axis=1)   # used with h_0
    rhs1 = jnp.concatenate([w1h_p, wo1], axis=1)   # used with h_1
    return (w1x_p, b1_p, rhs0, rhs1, wo2, bo)


def netrnn_reference(x, params):
    """Pure-JAX f32 reference mirroring the PyTorch forward exactly."""
    w1x, w1h, b1, w2, b2, w3, b3 = params
    batch = x.shape[0]
    latent = jnp.zeros((batch, w1h.shape[0]), jnp.float32)
    w1 = jnp.concatenate([w1x, w1h], axis=0)
    outs = []
    for i in range(3):
        y = jnp.concatenate([x, latent], axis=1)
        latent = jax.nn.relu(y @ w1 + b1)
        outs.append(latent @ w2 + b2 if i == 0 else latent @ w3 + b3)
    return tuple(outs)


def netrnn_reference_matched(x, params, weight_dtype):
    """Reference with the same bf16 MXU-operand / f32-accumulation precision
    and the same hoisted (x@W1x + b1) structure as the kernel."""
    w1x, w1h, b1, w2, b2, w3, b3 = params
    dot = lambda a, b: jnp.dot(a.astype(weight_dtype), b.astype(weight_dtype),
                               preferred_element_type=jnp.float32)
    xwb = dot(x, w1x) + b1
    h = jax.nn.relu(xwb)
    y0 = dot(h, w2) + b2
    h = jax.nn.relu(xwb + dot(h, w1h))
    y1 = dot(h, w3) + b3
    h = jax.nn.relu(xwb + dot(h, w1h))
    y2 = dot(h, w3) + b3
    return y0, y1, y2


if __name__ == "__main__":
    # Model dims from the module definition.
    input_size = 531
    hidden_sizes = 267
    output_size = 3
    batch_size = 8

    key = jax.random.PRNGKey(0)
    k_param, k_x = jax.random.split(key)
    params = init_params(k_param, input_size, hidden_sizes, output_size)
    kparams = pack_params(params, weight_dtype=jnp.bfloat16)
    x = jax.random.normal(k_x, (batch_size, input_size), jnp.float32)

    y0, y1, y2 = netrnn_forward(x, kparams,
                                out2=output_size, out3=output_size + 1)
    jax.block_until_ready((y0, y1, y2))

    assert y0.shape == (batch_size, output_size)
    assert y1.shape == (batch_size, output_size + 1)
    assert y2.shape == (batch_size, output_size + 1)

    # Tight check against a precision-matched (bf16 operands, f32 acc) reference.
    m0, m1, m2 = netrnn_reference_matched(x, params, jnp.bfloat16)
    for got, ref in ((y0, m0), (y1, m1), (y2, m2)):
        assert jnp.allclose(got, ref, atol=5e-4, rtol=5e-4), \
            float(jnp.max(jnp.abs(got - ref)))

    # Loose check against the exact f32 PyTorch-equivalent forward
    # (difference is bf16 weight/activation rounding only).
    r0, r1, r2 = netrnn_reference(x, params)
    for got, ref in ((y0, r0), (y1, r1), (y2, r2)):
        assert jnp.allclose(got, ref, atol=5e-2, rtol=5e-2), \
            float(jnp.max(jnp.abs(got - ref)))

    print("KERNEL_OK")
</pallas_src>

<mosaic_0001>
module attributes {stable_mosaic.version = 11 : i64} {
  func.func @_netrnn_kernel(%arg0: i32, %arg1: memref<16x640xbf16, #tpu.memory_space<vmem>>, %arg2: memref<640x384xbf16, #tpu.memory_space<vmem>>, %arg3: memref<1x384xf32, #tpu.memory_space<vmem>>, %arg4: memref<384x512xbf16, #tpu.memory_space<vmem>>, %arg5: memref<384x512xbf16, #tpu.memory_space<vmem>>, %arg6: memref<384x128xbf16, #tpu.memory_space<vmem>>, %arg7: memref<1x128xf32, #tpu.memory_space<vmem>>, %arg8: memref<16x128xf32, #tpu.memory_space<vmem>>) attributes {dimension_semantics = [#tpu.dimension_semantics<parallel>], iteration_bounds = array<i64: 1>, scalar_prefetch = 0 : i64, scratch_operands = 0 : i64, tpu.core_type = #tpu.core_type<tc>, window_params = [{transform_indices = @transform_0, window_bounds = array<i64: 16, 640>}, {pipeline_mode = #tpu.pipeline_mode<synchronous>, transform_indices = @transform_1, window_bounds = array<i64: 640, 384>}, {pipeline_mode = #tpu.pipeline_mode<synchronous>, transform_indices = @transform_2, window_bounds = array<i64: 1, 384>}, {pipeline_mode = #tpu.pipeline_mode<synchronous>, transform_indices = @transform_3, window_bounds = array<i64: 384, 512>}, {pipeline_mode = #tpu.pipeline_mode<synchronous>, transform_indices = @transform_4, window_bounds = array<i64: 384, 512>}, {pipeline_mode = #tpu.pipeline_mode<synchronous>, transform_indices = @transform_5, window_bounds = array<i64: 384, 128>}, {pipeline_mode = #tpu.pipeline_mode<synchronous>, transform_indices = @transform_6, window_bounds = array<i64: 1, 128>}, {transform_indices = @transform_7, window_bounds = array<i64: 16, 128>}]} {
    %c0 = arith.constant 0 : index
    %c0_0 = arith.constant 0 : index
    %0 = vector.load %arg1[%c0, %c0_0] : memref<16x640xbf16, #tpu.memory_space<vmem>>, vector<16x640xbf16>
    %c0_1 = arith.constant 0 : index
    %c0_2 = arith.constant 0 : index
    %1 = vector.load %arg2[%c0_1, %c0_2] : memref<640x384xbf16, #tpu.memory_space<vmem>>, vector<640x384xbf16>
    %cst = arith.constant dense<0.000000e+00> : vector<16x384xf32>
    %2 = tpu.matmul %0, %1, %cst {dimension_numbers = #tpu.dot_dimension_numbers<[1], [0], [0], [1], [0, 0, 1, 1], [], []>} : vector<16x640xbf16>, vector<640x384xbf16>, vector<16x384xf32> -> vector<16x384xf32>
    %c0_3 = arith.constant 0 : index
    %c0_4 = arith.constant 0 : index
    %3 = vector.load %arg3[%c0_3, %c0_4] : memref<1x384xf32, #tpu.memory_space<vmem>>, vector<1x384xf32>
    %4 = vector.broadcast %3 : vector<1x384xf32> to vector<16x384xf32>
    %5 = arith.addf %2, %4 : vector<16x384xf32>
    %cst_5 = arith.constant 0.000000e+00 : f32
    %6 = vector.broadcast %cst_5 : f32 to vector<16x384xf32>
    %7 = arith.maximumf %5, %6 : vector<16x384xf32>
    %8 = arith.truncf %7 : vector<16x384xf32> to vector<16x384xbf16>
    %c0_6 = arith.constant 0 : index
    %c0_7 = arith.constant 0 : index
    %9 = vector.load %arg4[%c0_6, %c0_7] : memref<384x512xbf16, #tpu.memory_space<vmem>>, vector<384x512xbf16>
    %cst_8 = arith.constant dense<0.000000e+00> : vector<16x512xf32>
    %10 = tpu.matmul %8, %9, %cst_8 {dimension_numbers = #tpu.dot_dimension_numbers<[1], [0], [0], [1], [0, 0, 1, 1], [], []>} : vector<16x384xbf16>, vector<384x512xbf16>, vector<16x512xf32> -> vector<16x512xf32>
    %11 = vector.extract_strided_slice %10 {offsets = [0, 384], sizes = [16, 128], strides = [1, 1]} : vector<16x512xf32> to vector<16x128xf32>
    %12 = vector.extract_strided_slice %10 {offsets = [0, 0], sizes = [16, 384], strides = [1, 1]} : vector<16x512xf32> to vector<16x384xf32>
    %13 = arith.addf %5, %12 : vector<16x384xf32>
    %cst_9 = arith.constant 0.000000e+00 : f32
    %14 = vector.broadcast %cst_9 : f32 to vector<16x384xf32>
    %15 = arith.maximumf %13, %14 : vector<16x384xf32>
    %16 = arith.truncf %15 : vector<16x384xf32> to vector<16x384xbf16>
    %c0_10 = arith.constant 0 : index
    %c0_11 = arith.constant 0 : index
    %17 = vector.load %arg5[%c0_10, %c0_11] : memref<384x512xbf16, #tpu.memory_space<vmem>>, vector<384x512xbf16>
    %cst_12 = arith.constant dense<0.000000e+00> : vector<16x512xf32>
    %18 = tpu.matmul %16, %17, %cst_12 {dimension_numbers = #tpu.dot_dimension_numbers<[1], [0], [0], [1], [0, 0, 1, 1], [], []>} : vector<16x384xbf16>, vector<384x512xbf16>, vector<16x512xf32> -> vector<16x512xf32>
    %19 = vector.extract_strided_slice %18 {offsets = [0, 384], sizes = [16, 128], strides = [1, 1]} : vector<16x512xf32> to vector<16x128xf32>
    %20 = arith.addf %11, %19 : vector<16x128xf32>
    %21 = vector.extract_strided_slice %18 {offsets = [0, 0], sizes = [16, 384], strides = [1, 1]} : vector<16x512xf32> to vector<16x384xf32>
    %22 = arith.addf %5, %21 : vector<16x384xf32>
    %cst_13 = arith.constant 0.000000e+00 : f32
    %23 = vector.broadcast %cst_13 : f32 to vector<16x384xf32>
    %24 = arith.maximumf %22, %23 : vector<16x384xf32>
    %25 = arith.truncf %24 : vector<16x384xf32> to vector<16x384xbf16>
    %c0_14 = arith.constant 0 : index
    %c0_15 = arith.constant 0 : index
    %26 = vector.load %arg6[%c0_14, %c0_15] : memref<384x128xbf16, #tpu.memory_space<vmem>>, vector<384x128xbf16>
    %cst_16 = arith.constant dense<0.000000e+00> : vector<16x128xf32>
    %27 = tpu.matmul %25, %26, %cst_16 {dimension_numbers = #tpu.dot_dimension_numbers<[1], [0], [0], [1], [0, 0, 1, 1], [], []>} : vector<16x384xbf16>, vector<384x128xbf16>, vector<16x128xf32> -> vector<16x128xf32>
    %28 = arith.addf %20, %27 : vector<16x128xf32>
    %c0_17 = arith.constant 0 : index
    %c0_18 = arith.constant 0 : index
    %29 = vector.load %arg7[%c0_17, %c0_18] : memref<1x128xf32, #tpu.memory_space<vmem>>, vector<1x128xf32>
    %30 = vector.broadcast %29 : vector<1x128xf32> to vector<16x128xf32>
    %31 = arith.addf %28, %30 : vector<16x128xf32>
    %c0_19 = arith.constant 0 : index
    %c0_20 = arith.constant 0 : index
    %32 = vector.load %arg8[%c0_19, %c0_20] : memref<16x128xf32, #tpu.memory_space<vmem>>, vector<16x128xf32>
    tpu.vector_store %arg8[%c0_19, %c0_20], %31 {strides = array<i32>} : memref<16x128xf32, #tpu.memory_space<vmem>>, vector<16x128xf32>,
    return
  }
  func.func @transform_0(%arg0: i32) -> (i32, i32) {
    %c0_i32 = arith.constant 0 : i32
    %c0_i32_0 = arith.constant 0 : i32
    return %arg0, %c0_i32 : i32, i32
  }
  func.func @transform_1(%arg0: i32) -> (i32, i32) {
    %c0_i32 = arith.constant 0 : i32
    %c0_i32_0 = arith.constant 0 : i32
    %c0_i32_1 = arith.constant 0 : i32
    return %c0_i32, %c0_i32_0 : i32, i32
  }
  func.func @transform_2(%arg0: i32) -> (i32, i32) {
    %c0_i32 = arith.constant 0 : i32
    %c0_i32_0 = arith.constant 0 : i32
    %c0_i32_1 = arith.constant 0 : i32
    return %c0_i32, %c0_i32_0 : i32, i32
  }
  func.func @transform_3(%arg0: i32) -> (i32, i32) {
    %c0_i32 = arith.constant 0 : i32
    %c0_i32_0 = arith.constant 0 : i32
    %c0_i32_1 = arith.constant 0 : i32
    return %c0_i32, %c0_i32_0 : i32, i32
  }
  func.func @transform_4(%arg0: i32) -> (i32, i32) {
    %c0_i32 = arith.constant 0 : i32
    %c0_i32_0 = arith.constant 0 : i32
    %c0_i32_1 = arith.constant 0 : i32
    return %c0_i32, %c0_i32_0 : i32, i32
  }
  func.func @transform_5(%arg0: i32) -> (i32, i32) {
    %c0_i32 = arith.constant 0 : i32
    %c0_i32_0 = arith.constant 0 : i32
    %c0_i32_1 = arith.constant 0 : i32
    return %c0_i32, %c0_i32_0 : i32, i32
  }
  func.func @transform_6(%arg0: i32) -> (i32, i32) {
    %c0_i32 = arith.constant 0 : i32
    %c0_i32_0 = arith.constant 0 : i32
    %c0_i32_1 = arith.constant 0 : i32
    return %c0_i32, %c0_i32_0 : i32, i32
  }
  func.func @transform_7(%arg0: i32) -> (i32, i32) {
    %c0_i32 = arith.constant 0 : i32
    %c0_i32_0 = arith.constant 0 : i32
    return %arg0, %c0_i32 : i32, i32
  }
}

</mosaic_0001>

<llo_original>
// kernel: netrnn_forward.1
$region0: #{netrnn_forward.1}
  #allocation0 [shape = 'u32[]', space=smem, size = 0x4, offset = 0x4, fixed_abs, tag = 'smem constant byte address 0x4 - core index']
  #allocation1 [shape = 'u32[72,128]{1,0:T(1,128)}', space=vmem, size = 0x9000, scoped, tag = 'internal scratch']
  %s0 = inlined_call_operand.vmem [shape: bf16[16,640], index: 0, kind: input, shape index: {}]
  %s1 = inlined_call_operand.hbm [shape: bf16[640,384], index: 1, kind: input, shape index: {}]
  %s2 = inlined_call_operand.vmem [shape: f32[1,384], index: 2, kind: input, shape index: {}]
  %s3 = inlined_call_operand.hbm [shape: bf16[384,512], index: 3, kind: input, shape index: {}]
  %s4 = inlined_call_operand.hbm [shape: bf16[384,512], index: 4, kind: input, shape index: {}]
  %s5 = inlined_call_operand.hbm [shape: bf16[384,128], index: 5, kind: input, shape index: {}]
  %s6 = inlined_call_operand.vmem [shape: f32[1,128], index: 6, kind: input, shape index: {}]
  %s7 = inlined_call_operand.vmem [shape: f32[16,128], index: 7, kind: output, shape index: {}]
  %s8 = sld [smem:[#allocation0]]
  $region54: #{netrnn_forward.1} parent=0
    _
  %s10 = ssub.s32 1, %s8
  %s11 = scalar_select 0, %s10, %s8
  $region1: #{netrnn_forward.1} parent=0
    #allocation2 [shape = 'u8[491520]{0}', space=vmem, size = 0x78000, scoped, tag = 'input window, operand 1, single buffered']
    #allocation3 [shape = 's32[1]{0}', space=sflag, size = 0x4, scoped, tag = 'scoped memory for netrnn_forward.1']
    #allocation4 [shape = 'u8[393216]{0}', space=vmem, size = 0x60000, scoped, tag = 'input window, operand 3, single buffered']
    #allocation5 [shape = 's32[1]{0}', space=sflag, size = 0x4, scoped, tag = 'scoped memory for netrnn_forward.1']
    #allocation6 [shape = 'u8[393216]{0}', space=vmem, size = 0x60000, scoped, tag = 'input window, operand 4, single buffered']
    #allocation7 [shape = 'u8[98304]{0}', space=vmem, size = 0x18000, scoped, tag = 'input window, operand 5, single buffered']
    #allocation8 [shape = 's32[1]{0}', space=sflag, size = 0x4, scoped, tag = 'scoped memory for netrnn_forward.1']
    %12 = vsyncpa [#allocation3], 0
    %13 = vsyncpa [#allocation5], 0
    %14 = vsyncpa [#allocation8], 0
    // Predicated region
    $region2: #{netrnn_forward.1} parent=1 // pred_check
      _
    $region3: #{netrnn_forward.1} parent=1 // pred_check_branch
      %16 = sbr.rel (0) target = $region5
    $region4: #{netrnn_forward.1} parent=1 // pred_region
      _
    $region5: #{netrnn_forward.1} parent=1 // pred_fallthru
      _
    // Predicated region
    $region6: #{netrnn_forward.1} parent=1 // pred_check
      _
    $region7: #{netrnn_forward.1} parent=1 // pred_check_branch
      %18 = sbr.rel (0) target = $region9
    $region8: #{netrnn_forward.1} parent=1 // pred_region
      %20 = vsyncadd [#allocation3], 0
      %s21 = sshll.u32 %s1, 4
      %s22 = int_to_ptr.hbm [resolvable:$true] %s21
      %s23 = sshll.u32 [#allocation2], 4
      %s24 = int_to_ptr.vmem [resolvable:$true] %s23
      %29 = dma.hbm_to_vmem [thread:$0]  %s22, 15360, %s24, [#allocation3], 192, 192, 12
    $region9: #{netrnn_forward.1} parent=1 // pred_fallthru
      _
    // Predicated region
    $region10: #{netrnn_forward.1} parent=1 // pred_check
      _
    $region11: #{netrnn_forward.1} parent=1 // pred_check_branch
      %31 = sbr.rel (0) target = $region13
    $region12: #{netrnn_forward.1} parent=1 // pred_region
      _
    $region13: #{netrnn_forward.1} parent=1 // pred_fallthru
      _
    // Predicated region
    $region14: #{netrnn_forward.1} parent=1 // pred_check
      _
    $region15: #{netrnn_forward.1} parent=1 // pred_check_branch
      %33 = sbr.rel (0) target = $region17
    $region16: #{netrnn_forward.1} parent=1 // pred_region
      %35 = vsyncadd [#allocation5], 0
      %s36 = sshll.u32 %s3, 4
      %s37 = int_to_ptr.hbm [resolvable:$true] %s36
      %s38 = sshll.u32 [#allocation4], 4
      %s39 = int_to_ptr.vmem [resolvable:$true] %s38
      %44 = dma.hbm_to_vmem [thread:$0]  %s37, 12288, %s39, [#allocation5], 256, 256, 16
    $region17: #{netrnn_forward.1} parent=1 // pred_fallthru
      _
    // Predicated region
    $region18: #{netrnn_forward.1} parent=1 // pred_check
      _
    $region19: #{netrnn_forward.1} parent=1 // pred_check_branch
      %46 = sbr.rel (0) target = $region21
    $region20: #{netrnn_forward.1} parent=1 // pred_region
      %48 = vsyncadd [#allocation5], 0
      %s49 = sshll.u32 %s4, 4
      %s50 = int_to_ptr.hbm [resolvable:$true] %s49
      %s51 = sshll.u32 [#allocation6], 4
      %s52 = int_to_ptr.vmem [resolvable:$true] %s51
      %57 = dma.hbm_to_vmem [thread:$0]  %s50, 12288, %s52, [#allocation5], 256, 256, 16
    $region21: #{netrnn_forward.1} parent=1 // pred_fallthru
      _
    // Predicated region
    $region22: #{netrnn_forward.1} parent=1 // pred_check
      _
    $region23: #{netrnn_forward.1} parent=1 // pred_check_branch
      %59 = sbr.rel (0) target = $region25
    $region24: #{netrnn_forward.1} parent=1 // pred_region
      %61 = vsyncadd [#allocation8], 0
      %s62 = sshll.u32 %s5, 4
      %s63 = int_to_ptr.hbm [resolvable:$true] %s62
      %s64 = sshll.u32 [#allocation7], 4
      %s65 = int_to_ptr.vmem [resolvable:$true] %s64
      %70 = dma.hbm_to_vmem [thread:$0]  %s63, 3072, %s65, [#allocation8], 64, 64, 4
    $region25: #{netrnn_forward.1} parent=1 // pred_fallthru
      _
    // Predicated region
    $region26: #{netrnn_forward.1} parent=1 // pred_check
      _
    $region27: #{netrnn_forward.1} parent=1 // pred_check_branch
      %72 = sbr.rel (0) target = $region29
    $region28: #{netrnn_forward.1} parent=1 // pred_region
      _
    $region29: #{netrnn_forward.1} parent=1 // pred_fallthru
      _
    // Predicated region
    $region30: #{netrnn_forward.1} parent=1 // pred_check
      _
    $region31: #{netrnn_forward.1} parent=1 // pred_check_branch
      %74 = sbr.rel (0) target = $region33
    $region32: #{netrnn_forward.1} parent=1 // pred_region
      %76 = dma.done [#allocation3], 15360
    $region33: #{netrnn_forward.1} parent=1 // pred_fallthru
      _
    // Predicated region
    $region34: #{netrnn_forward.1} parent=1 // pred_check
      _
    $region35: #{netrnn_forward.1} parent=1 // pred_check_branch
      %78 = sbr.rel (0) target = $region37
    $region36: #{netrnn_forward.1} parent=1 // pred_region
      %80 = dma.done [#allocation5], 12288
    $region37: #{netrnn_forward.1} parent=1 // pred_fallthru
      _
    // Predicated region
    $region38: #{netrnn_forward.1} parent=1 // pred_check
      _
    $region39: #{netrnn_forward.1} parent=1 // pred_check_branch
      %82 = sbr.rel (0) target = $region41
    $region40: #{netrnn_forward.1} parent=1 // pred_region
      %84 = dma.done [#allocation5], 12288
    $region41: #{netrnn_forward.1} parent=1 // pred_fallthru
      _
    // Predicated region
    $region42: #{netrnn_forward.1} parent=1 // pred_check
      _
    $region43: #{netrnn_forward.1} parent=1 // pred_check_branch
      %86 = sbr.rel (0) target = $region45
    $region44: #{netrnn_forward.1} parent=1 // pred_region
      %88 = dma.done [#allocation8], 3072
    $region45: #{netrnn_forward.1} parent=1 // pred_fallthru
      _
    %v89 = vld [vmem:[%s0] sm:$0xff]
    %v90 = vld [vmem:[%s0 + $0x8] sm:$0xff]
    %v91 = vld [vmem:[%s0 + $0x10] sm:$0xf]
    %v92 = vld [vmem:[%s0 + $0x14] sm:$0xff]
    %v93 = vld [vmem:[%s0 + $0x1c] sm:$0xff]
    %v94 = vld [vmem:[%s0 + $0x24] sm:$0xf]
    %v95 = vld [vmem:[#allocation2] sm:$0xff]
    %v96 = vld [vmem:[#allocation2 + $0x8] sm:$0xf]
    %v97 = vld [vmem:[#allocation2 + $0xc] sm:$0xff]
    %v98 = vld [vmem:[#allocation2 + $0x14] sm:$0xf]
    %v99 = vld [vmem:[#allocation2 + $0x18] sm:$0xff]
    %v100 = vld [vmem:[#allocation2 + $0x20] sm:$0xf]
    %v101 = vld [vmem:[#allocation2 + $0x24] sm:$0xff]
    %v102 = vld [vmem:[#allocation2 + $0x2c] sm:$0xf]
    %v103 = vld [vmem:[#allocation2 + $0x30] sm:$0xff]
    %v104 = vld [vmem:[#allocation2 + $0x38] sm:$0xf]
    %v105 = vld [vmem:[#allocation2 + $0x3c] sm:$0xff]
    %v106 = vld [vmem:[#allocation2 + $0x44] sm:$0xf]
    %v107 = vld [vmem:[#allocation2 + $0x48] sm:$0xff]
    %v108 = vld [vmem:[#allocation2 + $0x50] sm:$0xf]
    %v109 = vld [vmem:[#allocation2 + $0x54] sm:$0xff]
    %v110 = vld [vmem:[#allocation2 + $0x5c] sm:$0xf]
    %v111 = vld [vmem:[#allocation2 + $0x60] sm:$0xff]
    %v112 = vld [vmem:[#allocation2 + $0x68] sm:$0xf]
    %v113 = vld [vmem:[#allocation2 + $0x6c] sm:$0xff]
    %v114 = vld [vmem:[#allocation2 + $0x74] sm:$0xf]
    %v115 = vld [vmem:[#allocation2 + $0x78] sm:$0xff]
    %v116 = vld [vmem:[#allocation2 + $0x80] sm:$0xf]
    %v117 = vld [vmem:[#allocation2 + $0x84] sm:$0xff]
    %v118 = vld [vmem:[#allocation2 + $0x8c] sm:$0xf]
    %v119 = vld [vmem:[#allocation2 + $0x90] sm:$0xff]
    %v120 = vld [vmem:[#allocation2 + $0x98] sm:$0xf]
    %v121 = vld [vmem:[#allocation2 + $0x9c] sm:$0xff]
    %v122 = vld [vmem:[#allocation2 + $0xa4] sm:$0xf]
    %v123 = vld [vmem:[#allocation2 + $0xa8] sm:$0xff]
    %v124 = vld [vmem:[#allocation2 + $0xb0] sm:$0xf]
    %v125 = vld [vmem:[#allocation2 + $0xb4] sm:$0xff]
    %v126 = vld [vmem:[#allocation2 + $0xbc] sm:$0xf]
    %v127 = vld [vmem:[#allocation2 + $0xc0] sm:$0xff]
    %v128 = vld [vmem:[#allocation2 + $0xc8] sm:$0xf]
    %v129 = vld [vmem:[#allocation2 + $0xcc] sm:$0xff]
    %v130 = vld [vmem:[#allocation2 + $0xd4] sm:$0xf]
    %v131 = vld [vmem:[#allocation2 + $0xd8] sm:$0xff]
    %v132 = vld [vmem:[#allocation2 + $0xe0] sm:$0xf]
    %v133 = vld [vmem:[#allocation2 + $0xe4] sm:$0xff]
    %v134 = vld [vmem:[#allocation2 + $0xec] sm:$0xf]
    %v135 = vld [vmem:[#allocation2 + $0xf0] sm:$0xff]
    %v136 = vld [vmem:[#allocation2 + $0xf8] sm:$0xf]
    %v137 = vld [vmem:[#allocation2 + $0xfc] sm:$0xff]
    %v138 = vld [vmem:[#allocation2 + $0x104] sm:$0xf]
    %v139 = vld [vmem:[#allocation2 + $0x108] sm:$0xff]
    %v140 = vld [vmem:[#allocation2 + $0x110] sm:$0xf]
    %v141 = vld [vmem:[#allocation2 + $0x114] sm:$0xff]
    %v142 = vld [vmem:[#allocation2 + $0x11c] sm:$0xf]
    %v143 = vld [vmem:[#allocation2 + $0x120] sm:$0xff]
    %v144 = vld [vmem:[#allocation2 + $0x128] sm:$0xf]
    %v145 = vld [vmem:[#allocation2 + $0x12c] sm:$0xff]
    %v146 = vld [vmem:[#allocation2 + $0x134] sm:$0xf]
    %v147 = vld [vmem:[#allocation2 + $0x138] sm:$0xff]
    %v148 = vld [vmem:[#allocation2 + $0x140] sm:$0xf]
    %v149 = vld [vmem:[#allocation2 + $0x144] sm:$0xff]
    %v150 = vld [vmem:[#allocation2 + $0x14c] sm:$0xf]
    %v151 = vld [vmem:[#allocation2 + $0x150] sm:$0xff]
    %v152 = vld [vmem:[#allocation2 + $0x158] sm:$0xf]
    %v153 = vld [vmem:[#allocation2 + $0x15c] sm:$0xff]
    %v154 = vld [vmem:[#allocation2 + $0x164] sm:$0xf]
    %v155 = vld [vmem:[#allocation2 + $0x168] sm:$0xff]
    %v156 = vld [vmem:[#allocation2 + $0x170] sm:$0xf]
    %v157 = vld [vmem:[#allocation2 + $0x174] sm:$0xff]
    %v158 = vld [vmem:[#allocation2 + $0x17c] sm:$0xf]
    %v159 = vld [vmem:[#allocation2 + $0x180] sm:$0xff]
    %v160 = vld [vmem:[#allocation2 + $0x188] sm:$0xf]
    %v161 = vld [vmem:[#allocation2 + $0x18c] sm:$0xff]
    %v162 = vld [vmem:[#allocation2 + $0x194] sm:$0xf]
    %v163 = vld [vmem:[#allocation2 + $0x198] sm:$0xff]
    %v164 = vld [vmem:[#allocation2 + $0x1a0] sm:$0xf]
    %v165 = vld [vmem:[#allocation2 + $0x1a4] sm:$0xff]
    %v166 = vld [vmem:[#allocation2 + $0x1ac] sm:$0xf]
    %v167 = vld [vmem:[#allocation2 + $0x1b0] sm:$0xff]
    %v168 = vld [vmem:[#allocation2 + $0x1b8] sm:$0xf]
    %v169 = vld [vmem:[#allocation2 + $0x1bc] sm:$0xff]
    %v170 = vld [vmem:[#allocation2 + $0x1c4] sm:$0xf]
    %v171 = vld [vmem:[#allocation2 + $0x1c8] sm:$0xff]
    %v172 = vld [vmem:[#allocation2 + $0x1d0] sm:$0xf]
    %v173 = vld [vmem:[#allocation2 + $0x1d4] sm:$0xff]
    %v174 = vld [vmem:[#allocation2 + $0x1dc] sm:$0xf]
    %v175 = vld [vmem:[#allocation2 + $0x1e0] sm:$0xff]
    %v176 = vld [vmem:[#allocation2 + $0x1e8] sm:$0xf]
    %v177 = vld [vmem:[#allocation2 + $0x1ec] sm:$0xff]
    %v178 = vld [vmem:[#allocation2 + $0x1f4] sm:$0xf]
    %v179 = vld [vmem:[#allocation2 + $0x1f8] sm:$0xff]
    %v180 = vld [vmem:[#allocation2 + $0x200] sm:$0xf]
    %v181 = vld [vmem:[#allocation2 + $0x204] sm:$0xff]
    %v182 = vld [vmem:[#allocation2 + $0x20c] sm:$0xf]
    %v183 = vld [vmem:[#allocation2 + $0x210] sm:$0xff]
    %v184 = vld [vmem:[#allocation2 + $0x218] sm:$0xf]
    %v185 = vld [vmem:[#allocation2 + $0x21c] sm:$0xff]
    %v186 = vld [vmem:[#allocation2 + $0x224] sm:$0xf]
    %v187 = vld [vmem:[#allocation2 + $0x228] sm:$0xff]
    %v188 = vld [vmem:[#allocation2 + $0x230] sm:$0xf]
    %v189 = vld [vmem:[#allocation2 + $0x234] sm:$0xff]
    %v190 = vld [vmem:[#allocation2 + $0x23c] sm:$0xf]
    %v191 = vld [vmem:[#allocation2 + $0x240] sm:$0xff]
    %v192 = vld [vmem:[#allocation2 + $0x248] sm:$0xf]
    %v193 = vld [vmem:[#allocation2 + $0x24c] sm:$0xff]
    %v194 = vld [vmem:[#allocation2 + $0x254] sm:$0xf]
    %v195 = vld [vmem:[#allocation2 + $0x258] sm:$0xff]
    %v196 = vld [vmem:[#allocation2 + $0x260] sm:$0xf]
    %v197 = vld [vmem:[#allocation2 + $0x264] sm:$0xff]
    %v198 = vld [vmem:[#allocation2 + $0x26c] sm:$0xf]
    %v199 = vld [vmem:[#allocation2 + $0x270] sm:$0xff]
    %v200 = vld [vmem:[#allocation2 + $0x278] sm:$0xf]
    %v201 = vld [vmem:[#allocation2 + $0x27c] sm:$0xff]
    %v202 = vld [vmem:[#allocation2 + $0x284] sm:$0xf]
    %v203 = vld [vmem:[#allocation2 + $0x288] sm:$0xff]
    %v204 = vld [vmem:[#allocation2 + $0x290] sm:$0xf]
    %v205 = vld [vmem:[#allocation2 + $0x294] sm:$0xff]
    %v206 = vld [vmem:[#allocation2 + $0x29c] sm:$0xf]
    %v207 = vld [vmem:[#allocation2 + $0x2a0] sm:$0xff]
    %v208 = vld [vmem:[#allocation2 + $0x2a8] sm:$0xf]
    %v209 = vld [vmem:[#allocation2 + $0x2ac] sm:$0xff]
    %v210 = vld [vmem:[#allocation2 + $0x2b4] sm:$0xf]
    %v211 = vld [vmem:[#allocation2 + $0x2b8] sm:$0xff]
    %v212 = vld [vmem:[#allocation2 + $0x2c0] sm:$0xf]
    %v213 = vld [vmem:[#allocation2 + $0x2c4] sm:$0xff]
    %v214 = vld [vmem:[#allocation2 + $0x2cc] sm:$0xf]
    %v215 = vld [vmem:[#allocation2 + $0x2d0] sm:$0xff]
    %v216 = vld [vmem:[#allocation2 + $0x2d8] sm:$0xf]
    %v217 = vld [vmem:[#allocation2 + $0x2dc] sm:$0xff]
    %v218 = vld [vmem:[#allocation2 + $0x2e4] sm:$0xf]
    %v219 = vld [vmem:[#allocation2 + $0x2e8] sm:$0xff]
    %v220 = vld [vmem:[#allocation2 + $0x2f0] sm:$0xf]
    %v221 = vld [vmem:[#allocation2 + $0x2f4] sm:$0xff]
    %v222 = vld [vmem:[#allocation2 + $0x2fc] sm:$0xf]
    %v223 = vld [vmem:[#allocation2 + $0x300] sm:$0xff]
    %v224 = vld [vmem:[#allocation2 + $0x308] sm:$0xf]
    %v225 = vld [vmem:[#allocation2 + $0x30c] sm:$0xff]
    %v226 = vld [vmem:[#allocation2 + $0x314] sm:$0xf]
    %v227 = vld [vmem:[#allocation2 + $0x318] sm:$0xff]
    %v228 = vld [vmem:[#allocation2 + $0x320] sm:$0xf]
    %v229 = vld [vmem:[#allocation2 + $0x324] sm:$0xff]
    %v230 = vld [vmem:[#allocation2 + $0x32c] sm:$0xf]
    %v231 = vld [vmem:[#allocation2 + $0x330] sm:$0xff]
    %v232 = vld [vmem:[#allocation2 + $0x338] sm:$0xf]
    %v233 = vld [vmem:[#allocation2 + $0x33c] sm:$0xff]
    %v234 = vld [vmem:[#allocation2 + $0x344] sm:$0xf]
    %v235 = vld [vmem:[#allocation2 + $0x348] sm:$0xff]
    %v236 = vld [vmem:[#allocation2 + $0x350] sm:$0xf]
    %v237 = vld [vmem:[#allocation2 + $0x354] sm:$0xff]
    %v238 = vld [vmem:[#allocation2 + $0x35c] sm:$0xf]
    %v239 = vld [vmem:[#allocation2 + $0x360] sm:$0xff]
    %v240 = vld [vmem:[#allocation2 + $0x368] sm:$0xf]
    %v241 = vld [vmem:[#allocation2 + $0x36c] sm:$0xff]
    %v242 = vld [vmem:[#allocation2 + $0x374] sm:$0xf]
    %v243 = vld [vmem:[#allocation2 + $0x378] sm:$0xff]
    %v244 = vld [vmem:[#allocation2 + $0x380] sm:$0xf]
    %v245 = vld [vmem:[#allocation2 + $0x384] sm:$0xff]
    %v246 = vld [vmem:[#allocation2 + $0x38c] sm:$0xf]
    %v247 = vld [vmem:[#allocation2 + $0x390] sm:$0xff]
    %v248 = vld [vmem:[#allocation2 + $0x398] sm:$0xf]
    %v249 = vld [vmem:[#allocation2 + $0x39c] sm:$0xff]
    %v250 = vld [vmem:[#allocation2 + $0x3a4] sm:$0xf]
    %v251 = vld [vmem:[#allocation2 + $0x3a8] sm:$0xff]
    %v252 = vld [vmem:[#allocation2 + $0x3b0] sm:$0xf]
    %v253 = vld [vmem:[#allocation2 + $0x3b4] sm:$0xff]
    %v254 = vld [vmem:[#allocation2 + $0x3bc] sm:$0xf]
    %v255 = vld [vmem:[%s2] sm:$0x7]
    %v257 = vperm.slane %v255, 0
    %v258 = vperm.slane %v255, 1
    %v259 = vperm.slane %v255, 2
    %v269 = vunpack.c.l.b16 %v89
    %v270 = vunpack.c.h.b16 %v89
    %v271 = vunpack.c.l.b16 %v90
    %v272 = vunpack.c.h.b16 %v90
    %v273 = vunpack.c.l.b16 %v91
    %v274 = vunpack.c.l.b16 %v92
    %v275 = vunpack.c.h.b16 %v92
    %v276 = vunpack.c.l.b16 %v93
    %v277 = vunpack.c.h.b16 %v93
    %v278 = vunpack.c.l.b16 %v94
    %v279 = vpack.c.b16 %v274, %v269
    %v280 = vpack.c.b16 %v275, %v270
    %v281 = vpack.c.b16 %v276, %v271
    %v282 = vpack.c.b16 %v277, %v272
    %v283 = vpack.c.b16 %v278, %v273
    %v449 = vunpack.c.l.b16 %v95
    %v450 = vunpack.c.h.b16 %v95
    %v451 = vunpack.c.l.b16 %v96
    %v452 = vunpack.c.l.b16 %v97
    %v453 = vunpack.c.h.b16 %v97
    %v454 = vunpack.c.l.b16 %v98
    %v455 = vunpack.c.l.b16 %v99
    %v456 = vunpack.c.h.b16 %v99
    %v457 = vunpack.c.l.b16 %v100
    %v458 = vunpack.c.l.b16 %v101
    %v459 = vunpack.c.h.b16 %v101
    %v460 = vunpack.c.l.b16 %v102
    %v461 = vunpack.c.l.b16 %v103
    %v462 = vunpack.c.h.b16 %v103
    %v463 = vunpack.c.l.b16 %v104
    %v464 = vunpack.c.l.b16 %v105
    %v465 = vunpack.c.h.b16 %v105
    %v466 = vunpack.c.l.b16 %v106
    %v467 = vunpack.c.l.b16 %v107
    %v468 = vunpack.c.h.b16 %v107
    %v469 = vunpack.c.l.b16 %v108
    %v470 = vunpack.c.l.b16 %v109
    %v471 = vunpack.c.h.b16 %v109
    %v472 = vunpack.c.l.b16 %v110
    %v473 = vunpack.c.l.b16 %v111
    %v474 = vunpack.c.h.b16 %v111
    %v475 = vunpack.c.l.b16 %v112
    %v476 = vunpack.c.l.b16 %v113
    %v477 = vunpack.c.h.b16 %v113
    %v478 = vunpack.c.l.b16 %v114
    %v479 = vunpack.c.l.b16 %v115
    %v480 = vunpack.c.h.b16 %v115
    %v481 = vunpack.c.l.b16 %v116
    %v482 = vunpack.c.l.b16 %v117
    %v483 = vunpack.c.h.b16 %v117
    %v484 = vunpack.c.l.b16 %v118
    %v485 = vunpack.c.l.b16 %v119
    %v486 = vunpack.c.h.b16 %v119
    %v487 = vunpack.c.l.b16 %v120
    %v488 = vunpack.c.l.b16 %v121
    %v489 = vunpack.c.h.b16 %v121
    %v490 = vunpack.c.l.b16 %v122
    %v491 = vunpack.c.l.b16 %v123
    %v492 = vunpack.c.h.b16 %v123
    %v493 = vunpack.c.l.b16 %v124
    %v494 = vunpack.c.l.b16 %v125
    %v495 = vunpack.c.h.b16 %v125
    %v496 = vunpack.c.l.b16 %v126
    %v497 = vunpack.c.l.b16 %v127
    %v498 = vunpack.c.h.b16 %v127
    %v499 = vunpack.c.l.b16 %v128
    %v500 = vunpack.c.l.b16 %v129
    %v501 = vunpack.c.h.b16 %v129
    %v502 = vunpack.c.l.b16 %v130
    %v503 = vunpack.c.l.b16 %v131
    %v504 = vunpack.c.h.b16 %v131
    %v505 = vunpack.c.l.b16 %v132
    %v506 = vunpack.c.l.b16 %v133
    %v507 = vunpack.c.h.b16 %v133
    %v508 = vunpack.c.l.b16 %v134
    %v509 = vunpack.c.l.b16 %v135
    %v510 = vunpack.c.h.b16 %v135
    %v511 = vunpack.c.l.b16 %v136
    %v512 = vunpack.c.l.b16 %v137
    %v513 = vunpack.c.h.b16 %v137
    %v514 = vunpack.c.l.b16 %v138
    %v515 = vunpack.c.l.b16 %v139
    %v516 = vunpack.c.h.b16 %v139
    %v517 = vunpack.c.l.b16 %v140
    %v518 = vunpack.c.l.b16 %v141
    %v519 = vunpack.c.h.b16 %v141
    %v520 = vunpack.c.l.b16 %v142
    %v521 = vunpack.c.l.b16 %v143
    %v522 = vunpack.c.h.b16 %v143
    %v523 = vunpack.c.l.b16 %v144
    %v524 = vunpack.c.l.b16 %v145
    %v525 = vunpack.c.h.b16 %v145
    %v526 = vunpack.c.l.b16 %v146
    %v527 = vunpack.c.l.b16 %v147
    %v528 = vunpack.c.h.b16 %v147
    %v529 = vunpack.c.l.b16 %v148
    %v530 = vunpack.c.l.b16 %v149
    %v531 = vunpack.c.h.b16 %v149
    %v532 = vunpack.c.l.b16 %v150
    %v533 = vunpack.c.l.b16 %v151
    %v534 = vunpack.c.h.b16 %v151
    %v535 = vunpack.c.l.b16 %v152
    %v536 = vunpack.c.l.b16 %v153
    %v537 = vunpack.c.h.b16 %v153
    %v538 = vunpack.c.l.b16 %v154
    %v539 = vunpack.c.l.b16 %v155
    %v540 = vunpack.c.h.b16 %v155
    %v541 = vunpack.c.l.b16 %v156
    %v542 = vunpack.c.l.b16 %v157
    %v543 = vunpack.c.h.b16 %v157
    %v544 = vunpack.c.l.b16 %v158
    %v545 = vunpack.c.l.b16 %v159
    %v546 = vunpack.c.h.b16 %v159
    %v547 = vunpack.c.l.b16 %v160
    %v548 = vunpack.c.l.b16 %v161
    %v549 = vunpack.c.h.b16 %v161
    %v550 = vunpack.c.l.b16 %v162
    %v551 = vunpack.c.l.b16 %v163
    %v552 = vunpack.c.h.b16 %v163
    %v553 = vunpack.c.l.b16 %v164
    %v554 = vunpack.c.l.b16 %v165
    %v555 = vunpack.c.h.b16 %v165
    %v556 = vunpack.c.l.b16 %v166
    %v557 = vunpack.c.l.b16 %v167
    %v558 = vunpack.c.h.b16 %v167
    %v559 = vunpack.c.l.b16 %v168
    %v560 = vunpack.c.l.b16 %v169
    %v561 = vunpack.c.h.b16 %v169
    %v562 = vunpack.c.l.b16 %v170
    %v563 = vunpack.c.l.b16 %v171
    %v564 = vunpack.c.h.b16 %v171
    %v565 = vunpack.c.l.b16 %v172
    %v566 = vunpack.c.l.b16 %v173
    %v567 = vunpack.c.h.b16 %v173
    %v568 = vunpack.c.l.b16 %v174
    %v569 = vunpack.c.l.b16 %v175
    %v570 = vunpack.c.h.b16 %v175
    %v571 = vunpack.c.l.b16 %v176
    %v572 = vunpack.c.l.b16 %v177
    %v573 = vunpack.c.h.b16 %v177
    %v574 = vunpack.c.l.b16 %v178
    %v575 = vunpack.c.l.b16 %v179
    %v576 = vunpack.c.h.b16 %v179
    %v577 = vunpack.c.l.b16 %v180
    %v578 = vunpack.c.l.b16 %v181
    %v579 = vunpack.c.h.b16 %v181
    %v580 = vunpack.c.l.b16 %v182
    %v581 = vunpack.c.l.b16 %v183
    %v582 = vunpack.c.h.b16 %v183
    %v583 = vunpack.c.l.b16 %v184
    %v584 = vunpack.c.l.b16 %v185
    %v585 = vunpack.c.h.b16 %v185
    %v586 = vunpack.c.l.b16 %v186
    %v587 = vunpack.c.l.b16 %v187
    %v588 = vunpack.c.h.b16 %v187
    %v589 = vunpack.c.l.b16 %v188
    %v590 = vunpack.c.l.b16 %v189
    %v591 = vunpack.c.h.b16 %v189
    %v592 = vunpack.c.l.b16 %v190
    %v593 = vunpack.c.l.b16 %v191
    %v594 = vunpack.c.h.b16 %v191
    %v595 = vunpack.c.l.b16 %v192
    %v596 = vunpack.c.l.b16 %v193
    %v597 = vunpack.c.h.b16 %v193
    %v598 = vunpack.c.l.b16 %v194
    %v599 = vunpack.c.l.b16 %v195
    %v600 = vunpack.c.h.b16 %v195
    %v601 = vunpack.c.l.b16 %v196
    %v602 = vunpack.c.l.b16 %v197
    %v603 = vunpack.c.h.b16 %v197
    %v604 = vunpack.c.l.b16 %v198
    %v605 = vunpack.c.l.b16 %v199
    %v606 = vunpack.c.h.b16 %v199
    %v607 = vunpack.c.l.b16 %v200
    %v608 = vunpack.c.l.b16 %v201
    %v609 = vunpack.c.h.b16 %v201
    %v610 = vunpack.c.l.b16 %v202
    %v611 = vunpack.c.l.b16 %v203
    %v612 = vunpack.c.h.b16 %v203
    %v613 = vunpack.c.l.b16 %v204
    %v614 = vunpack.c.l.b16 %v205
    %v615 = vunpack.c.h.b16 %v205
    %v616 = vunpack.c.l.b16 %v206
    %v617 = vunpack.c.l.b16 %v207
    %v618 = vunpack.c.h.b16 %v207
    %v619 = vunpack.c.l.b16 %v208
    %v620 = vunpack.c.l.b16 %v209
    %v621 = vunpack.c.h.b16 %v209
    %v622 = vunpack.c.l.b16 %v210
    %v623 = vunpack.c.l.b16 %v211
    %v624 = vunpack.c.h.b16 %v211
    %v625 = vunpack.c.l.b16 %v212
    %v626 = vunpack.c.l.b16 %v213
    %v627 = vunpack.c.h.b16 %v213
    %v628 = vunpack.c.l.b16 %v214
    %v629 = vunpack.c.l.b16 %v215
    %v630 = vunpack.c.h.b16 %v215
    %v631 = vunpack.c.l.b16 %v216
    %v632 = vunpack.c.l.b16 %v217
    %v633 = vunpack.c.h.b16 %v217
    %v634 = vunpack.c.l.b16 %v218
    %v635 = vunpack.c.l.b16 %v219
    %v636 = vunpack.c.h.b16 %v219
    %v637 = vunpack.c.l.b16 %v220
    %v638 = vunpack.c.l.b16 %v221
    %v639 = vunpack.c.h.b16 %v221
    %v640 = vunpack.c.l.b16 %v222
    %v641 = vunpack.c.l.b16 %v223
    %v642 = vunpack.c.h.b16 %v223
    %v643 = vunpack.c.l.b16 %v224
    %v644 = vunpack.c.l.b16 %v225
    %v645 = vunpack.c.h.b16 %v225
    %v646 = vunpack.c.l.b16 %v226
    %v647 = vunpack.c.l.b16 %v227
    %v648 = vunpack.c.h.b16 %v227
    %v649 = vunpack.c.l.b16 %v228
    %v650 = vunpack.c.l.b16 %v229
    %v651 = vunpack.c.h.b16 %v229
    %v652 = vunpack.c.l.b16 %v230
    %v653 = vunpack.c.l.b16 %v231
    %v654 = vunpack.c.h.b16 %v231
    %v655 = vunpack.c.l.b16 %v232
    %v656 = vunpack.c.l.b16 %v233
    %v657 = vunpack.c.h.b16 %v233
    %v658 = vunpack.c.l.b16 %v234
    %v659 = vunpack.c.l.b16 %v235
    %v660 = vunpack.c.h.b16 %v235
    %v661 = vunpack.c.l.b16 %v236
    %v662 = vunpack.c.l.b16 %v237
    %v663 = vunpack.c.h.b16 %v237
    %v664 = vunpack.c.l.b16 %v238
    %v665 = vunpack.c.l.b16 %v239
    %v666 = vunpack.c.h.b16 %v239
    %v667 = vunpack.c.l.b16 %v240
    %v668 = vunpack.c.l.b16 %v241
    %v669 = vunpack.c.h.b16 %v241
    %v670 = vunpack.c.l.b16 %v242
    %v671 = vunpack.c.l.b16 %v243
    %v672 = vunpack.c.h.b16 %v243
    %v673 = vunpack.c.l.b16 %v244
    %v674 = vunpack.c.l.b16 %v245
    %v675 = vunpack.c.h.b16 %v245
    %v676 = vunpack.c.l.b16 %v246
    %v677 = vunpack.c.l.b16 %v247
    %v678 = vunpack.c.h.b16 %v247
    %v679 = vunpack.c.l.b16 %v248
    %v680 = vunpack.c.l.b16 %v249
    %v681 = vunpack.c.h.b16 %v249
    %v682 = vunpack.c.l.b16 %v250
    %v683 = vunpack.c.l.b16 %v251
    %v684 = vunpack.c.h.b16 %v251
    %v685 = vunpack.c.l.b16 %v252
    %v686 = vunpack.c.l.b16 %v253
    %v687 = vunpack.c.h.b16 %v253
    %v688 = vunpack.c.l.b16 %v254
    %v689 = vpack.c.b16 %v452, %v449
    %v690 = vpack.c.b16 %v453, %v450
    %v691 = vpack.c.b16 %v454, %v451
    %v692 = vpack.c.b16 %v458, %v455
    %v693 = vpack.c.b16 %v459, %v456
    %v694 = vpack.c.b16 %v460, %v457
    %v695 = vpack.c.b16 %v464, %v461
    %v696 = vpack.c.b16 %v465, %v462
    %v697 = vpack.c.b16 %v466, %v463
    %v698 = vpack.c.b16 %v470, %v467
    %v699 = vpack.c.b16 %v471, %v468
    %v700 = vpack.c.b16 %v472, %v469
    %v701 = vpack.c.b16 %v476, %v473
    %v702 = vpack.c.b16 %v477, %v474
    %v703 = vpack.c.b16 %v478, %v475
    %v704 = vpack.c.b16 %v482, %v479
    %v705 = vpack.c.b16 %v483, %v480
    %v706 = vpack.c.b16 %v484, %v481
    %v707 = vpack.c.b16 %v488, %v485
    %v708 = vpack.c.b16 %v489, %v486
    %v709 = vpack.c.b16 %v490, %v487
    %v710 = vpack.c.b16 %v494, %v491
    %v711 = vpack.c.b16 %v495, %v492
    %v712 = vpack.c.b16 %v496, %v493
    %v713 = vpack.c.b16 %v500, %v497
    %v714 = vpack.c.b16 %v501, %v498
    %v715 = vpack.c.b16 %v502, %v499
    %v716 = vpack.c.b16 %v506, %v503
    %v717 = vpack.c.b16 %v507, %v504
    %v718 = vpack.c.b16 %v508, %v505
    %v719 = vpack.c.b16 %v512, %v509
    %v720 = vpack.c.b16 %v513, %v510
    %v721 = vpack.c.b16 %v514, %v511
    %v722 = vpack.c.b16 %v518, %v515
    %v723 = vpack.c.b16 %v519, %v516
    %v724 = vpack.c.b16 %v520, %v517
    %v725 = vpack.c.b16 %v524, %v521
    %v726 = vpack.c.b16 %v525, %v522
    %v727 = vpack.c.b16 %v526, %v523
    %v728 = vpack.c.b16 %v530, %v527
    %v729 = vpack.c.b16 %v531, %v528
    %v730 = vpack.c.b16 %v532, %v529
    %v731 = vpack.c.b16 %v536, %v533
    %v732 = vpack.c.b16 %v537, %v534
    %v733 = vpack.c.b16 %v538, %v535
    %v734 = vpack.c.b16 %v542, %v539
    %v735 = vpack.c.b16 %v543, %v540
    %v736 = vpack.c.b16 %v544, %v541
    %v737 = vpack.c.b16 %v548, %v545
    %v738 = vpack.c.b16 %v549, %v546
    %v739 = vpack.c.b16 %v550, %v547
    %v740 = vpack.c.b16 %v554, %v551
    %v741 = vpack.c.b16 %v555, %v552
    %v742 = vpack.c.b16 %v556, %v553
    %v743 = vpack.c.b16 %v560, %v557
    %v744 = vpack.c.b16 %v561, %v558
    %v745 = vpack.c.b16 %v562, %v559
    %v746 = vpack.c.b16 %v566, %v563
    %v747 = vpack.c.b16 %v567, %v564
    %v748 = vpack.c.b16 %v568, %v565
    %v749 = vpack.c.b16 %v572, %v569
    %v750 = vpack.c.b16 %v573, %v570
    %v751 = vpack.c.b16 %v574, %v571
    %v752 = vpack.c.b16 %v578, %v575
    %v753 = vpack.c.b16 %v579, %v576
    %v754 = vpack.c.b16 %v580, %v577
    %v755 = vpack.c.b16 %v584, %v581
    %v756 = vpack.c.b16 %v585, %v582
    %v757 = vpack.c.b16 %v586, %v583
    %v758 = vpack.c.b16 %v590, %v587
    %v759 = vpack.c.b16 %v591, %v588
    %v760 = vpack.c.b16 %v592, %v589
    %v761 = vpack.c.b16 %v596, %v593
    %v762 = vpack.c.b16 %v597, %v594
    %v763 = vpack.c.b16 %v598, %v595
    %v764 = vpack.c.b16 %v602, %v599
    %v765 = vpack.c.b16 %v603, %v600
    %v766 = vpack.c.b16 %v604, %v601
    %v767 = vpack.c.b16 %v608, %v605
    %v768 = vpack.c.b16 %v609, %v606
    %v769 = vpack.c.b16 %v610, %v607
    %v770 = vpack.c.b16 %v614, %v611
    %v771 = vpack.c.b16 %v615, %v612
    %v772 = vpack.c.b16 %v616, %v613
    %v773 = vpack.c.b16 %v620, %v617
    %v774 = vpack.c.b16 %v621, %v618
    %v775 = vpack.c.b16 %v622, %v619
    %v776 = vpack.c.b16 %v626, %v623
    %v777 = vpack.c.b16 %v627, %v624
    %v778 = vpack.c.b16 %v628, %v625
    %v779 = vpack.c.b16 %v632, %v629
    %v780 = vpack.c.b16 %v633, %v630
    %v781 = vpack.c.b16 %v634, %v631
    %v782 = vpack.c.b16 %v638, %v635
    %v783 = vpack.c.b16 %v639, %v636
    %v784 = vpack.c.b16 %v640, %v637
    %v785 = vpack.c.b16 %v644, %v641
    %v786 = vpack.c.b16 %v645, %v642
    %v787 = vpack.c.b16 %v646, %v643
    %v788 = vpack.c.b16 %v650, %v647
    %v789 = vpack.c.b16 %v651, %v648
    %v790 = vpack.c.b16 %v652, %v649
    %v791 = vpack.c.b16 %v656, %v653
    %v792 = vpack.c.b16 %v657, %v654
    %v793 = vpack.c.b16 %v658, %v655
    %v794 = vpack.c.b16 %v662, %v659
    %v795 = vpack.c.b16 %v663, %v660
    %v796 = vpack.c.b16 %v664, %v661
    %v797 = vpack.c.b16 %v668, %v665
    %v798 = vpack.c.b16 %v669, %v666
    %v799 = vpack.c.b16 %v670, %v667
    %v800 = vpack.c.b16 %v674, %v671
    %v801 = vpack.c.b16 %v675, %v672
    %v802 = vpack.c.b16 %v676, %v673
    %v803 = vpack.c.b16 %v680, %v677
    %v804 = vpack.c.b16 %v681, %v678
    %v805 = vpack.c.b16 %v682, %v679
    %v806 = vpack.c.b16 %v686, %v683
    %v807 = vpack.c.b16 %v687, %v684
    %v808 = vpack.c.b16 %v688, %v685
    %929 = vmatpush.bf16.msra.mxu0 %v710
    %930 = vmatpush.bf16.msra.mxu0 %v707
    %931 = vmatpush.bf16.msra.mxu0 %v704
    %932 = vmatpush.bf16.msra.mxu0 %v701
    %933 = vmatpush.bf16.msra.mxu0 %v698
    %934 = vmatpush.bf16.msra.mxu0 %v695
    %935 = vmatpush.bf16.msra.mxu0 %v692
    %936 = vmatpush.bf16.msra.mxu0 %v689
    %937 = vmatmul.bf16.gmra.mxu0 %v279
    %v938 = vpop.f32.mrf.mxu0
    %v939 = vadd.f32 %v257, %v938
    %v940 = vpop.f32.mrf.mxu0
    %v941 = vadd.f32 %v257, %v940
    %942 = vdwg.mxu0
    %943 = vmatpush.bf16.msra.mxu0 %v734
    %944 = vmatpush.bf16.msra.mxu0 %v731
    %945 = vmatpush.bf16.msra.mxu0 %v728
    %946 = vmatpush.bf16.msra.mxu0 %v725
    %947 = vmatpush.bf16.msra.mxu0 %v722
    %948 = vmatpush.bf16.msra.mxu0 %v719
    %949 = vmatpush.bf16.msra.mxu0 %v716
    %950 = vmatpush.bf16.msra.mxu0 %v713
    %951 = vmatmul.bf16.gmra.mxu0 %v280
    %v952 = vpop.f32.mrf.mxu0
    %v953 = vadd.f32 %v939, %v952
    %v954 = vpop.f32.mrf.mxu0
    %v955 = vadd.f32 %v941, %v954
    %956 = vdwg.mxu0
    %957 = vmatpush.bf16.msra.mxu0 %v758
    %958 = vmatpush.bf16.msra.mxu0 %v755
    %959 = vmatpush.bf16.msra.mxu0 %v752
    %960 = vmatpush.bf16.msra.mxu0 %v749
    %961 = vmatpush.bf16.msra.mxu0 %v746
    %962 = vmatpush.bf16.msra.mxu0 %v743
    %963 = vmatpush.bf16.msra.mxu0 %v740
    %964 = vmatpush.bf16.msra.mxu0 %v737
    %965 = vmatmul.bf16.gmra.mxu0 %v281
    %v966 = vpop.f32.mrf.mxu0
    %v967 = vadd.f32 %v953, %v966
    %v968 = vpop.f32.mrf.mxu0
    %v969 = vadd.f32 %v955, %v968
    %970 = vdwg.mxu0
    %971 = vmatpush.bf16.msra.mxu0 %v782
    %972 = vmatpush.bf16.msra.mxu0 %v779
    %973 = vmatpush.bf16.msra.mxu0 %v776
    %974 = vmatpush.bf16.msra.mxu0 %v773
    %975 = vmatpush.bf16.msra.mxu0 %v770
    %976 = vmatpush.bf16.msra.mxu0 %v767
    %977 = vmatpush.bf16.msra.mxu0 %v764
    %978 = vmatpush.bf16.msra.mxu0 %v761
    %979 = vmatmul.bf16.gmra.mxu0 %v282
    %v980 = vpop.f32.mrf.mxu0
    %v981 = vadd.f32 %v967, %v980
    %v982 = vpop.f32.mrf.mxu0
    %v983 = vadd.f32 %v969, %v982
    %984 = vdwg.mxu0
    %985 = vmatpush.bf16.msra.mxu0 %v806
    %986 = vmatpush.bf16.msra.mxu0 %v803
    %987 = vmatpush.bf16.msra.mxu0 %v800
    %988 = vmatpush.bf16.msra.mxu0 %v797
    %989 = vmatpush.bf16.msra.mxu0 %v794
    %990 = vmatpush.bf16.msra.mxu0 %v791
    %991 = vmatpush.bf16.msra.mxu0 %v788
    %992 = vmatpush.bf16.msra.mxu0 %v785
    %993 = vmatmul.bf16.gmra.mxu0 %v283
    %v994 = vpop.f32.mrf.mxu0
    %v995 = vadd.f32 %v981, %v994
    %v996 = vpop.f32.mrf.mxu0
    %v997 = vadd.f32 %v983, %v996
    %998 = vdwg.mxu0
    %999 = vmatpush.bf16.msra.mxu0 %v711
    %1000 = vmatpush.bf16.msra.mxu0 %v708
    %1001 = vmatpush.bf16.msra.mxu0 %v705
    %1002 = vmatpush.bf16.msra.mxu0 %v702
    %1003 = vmatpush.bf16.msra.mxu0 %v699
    %1004 = vmatpush.bf16.msra.mxu0 %v696
    %1005 = vmatpush.bf16.msra.mxu0 %v693
    %1006 = vmatpush.bf16.msra.mxu0 %v690
    %1007 = vmatmul.bf16.gmra.mxu0 %v279
    %v1008 = vpop.f32.mrf.mxu0
    %v1009 = vadd.f32 %v258, %v1008
    %v1010 = vpop.f32.mrf.mxu0
    %v1011 = vadd.f32 %v258, %v1010
    %1012 = vdwg.mxu0
    %1013 = vmatpush.bf16.msra.mxu0 %v735
    %1014 = vmatpush.bf16.msra.mxu0 %v732
    %1015 = vmatpush.bf16.msra.mxu0 %v729
    %1016 = vmatpush.bf16.msra.mxu0 %v726
    %1017 = vmatpush.bf16.msra.mxu0 %v723
    %1018 = vmatpush.bf16.msra.mxu0 %v720
    %1019 = vmatpush.bf16.msra.mxu0 %v717
    %1020 = vmatpush.bf16.msra.mxu0 %v714
    %1021 = vmatmul.bf16.gmra.mxu0 %v280
    %v1022 = vpop.f32.mrf.mxu0
    %v1023 = vadd.f32 %v1009, %v1022
    %v1024 = vpop.f32.mrf.mxu0
    %v1025 = vadd.f32 %v1011, %v1024
    %1026 = vdwg.mxu0
    %1027 = vmatpush.bf16.msra.mxu0 %v759
    %1028 = vmatpush.bf16.msra.mxu0 %v756
    %1029 = vmatpush.bf16.msra.mxu0 %v753
    %1030 = vmatpush.bf16.msra.mxu0 %v750
    %1031 = vmatpush.bf16.msra.mxu0 %v747
    %1032 = vmatpush.bf16.msra.mxu0 %v744
    %1033 = vmatpush.bf16.msra.mxu0 %v741
    %1034 = vmatpush.bf16.msra.mxu0 %v738
    %1035 = vmatmul.bf16.gmra.mxu0 %v281
    %v1036 = vpop.f32.mrf.mxu0
    %v1037 = vadd.f32 %v1023, %v1036
    %v1038 = vpop.f32.mrf.mxu0
    %v1039 = vadd.f32 %v1025, %v1038
    %1040 = vdwg.mxu0
    %1041 = vmatpush.bf16.msra.mxu0 %v783
    %1042 = vmatpush.bf16.msra.mxu0 %v780
    %1043 = vmatpush.bf16.msra.mxu0 %v777
    %1044 = vmatpush.bf16.msra.mxu0 %v774
    %1045 = vmatpush.bf16.msra.mxu0 %v771
    %1046 = vmatpush.bf16.msra.mxu0 %v768
    %1047 = vmatpush.bf16.msra.mxu0 %v765
    %1048 = vmatpush.bf16.msra.mxu0 %v762
    %1049 = vmatmul.bf16.gmra.mxu0 %v282
    %v1050 = vpop.f32.mrf.mxu0
    %v1051 = vadd.f32 %v1037, %v1050
    %v1052 = vpop.f32.mrf.mxu0
    %v1053 = vadd.f32 %v1039, %v1052
    %1054 = vdwg.mxu0
    %1055 = vmatpush.bf16.msra.mxu0 %v807
    %1056 = vmatpush.bf16.msra.mxu0 %v804
    %1057 = vmatpush.bf16.msra.mxu0 %v801
    %1058 = vmatpush.bf16.msra.mxu0 %v798
    %1059 = vmatpush.bf16.msra.mxu0 %v795
    %1060 = vmatpush.bf16.msra.mxu0 %v792
    %1061 = vmatpush.bf16.msra.mxu0 %v789
    %1062 = vmatpush.bf16.msra.mxu0 %v786
    %1063 = vmatmul.bf16.gmra.mxu0 %v283
    %v1064 = vpop.f32.mrf.mxu0
    %v1065 = vadd.f32 %v1051, %v1064
    %v1066 = vpop.f32.mrf.mxu0
    %v1067 = vadd.f32 %v1053, %v1066
    %1068 = vdwg.mxu0
    %1069 = vmatpush.bf16.msra.mxu0 %v712
    %1070 = vmatpush.bf16.msra.mxu0 %v709
    %1071 = vmatpush.bf16.msra.mxu0 %v706
    %1072 = vmatpush.bf16.msra.mxu0 %v703
    %1073 = vmatpush.bf16.msra.mxu0 %v700
    %1074 = vmatpush.bf16.msra.mxu0 %v697
    %1075 = vmatpush.bf16.msra.mxu0 %v694
    %1076 = vmatpush.bf16.msra.mxu0 %v691
    %1077 = vmatmul.bf16.gmra.mxu0 %v279
    %v1078 = vpop.f32.mrf.mxu0
    %v1079 = vadd.f32 %v259, %v1078
    %v1080 = vpop.f32.mrf.mxu0
    %v1081 = vadd.f32 %v259, %v1080
    %1082 = vdwg.mxu0
    %1083 = vmatpush.bf16.msra.mxu0 %v736
    %1084 = vmatpush.bf16.msra.mxu0 %v733
    %1085 = vmatpush.bf16.msra.mxu0 %v730
    %1086 = vmatpush.bf16.msra.mxu0 %v727
    %1087 = vmatpush.bf16.msra.mxu0 %v724
    %1088 = vmatpush.bf16.msra.mxu0 %v721
    %1089 = vmatpush.bf16.msra.mxu0 %v718
    %1090 = vmatpush.bf16.msra.mxu0 %v715
    %1091 = vmatmul.bf16.gmra.mxu0 %v280
    %v1092 = vpop.f32.mrf.mxu0
    %v1093 = vadd.f32 %v1079, %v1092
    %v1094 = vpop.f32.mrf.mxu0
    %v1095 = vadd.f32 %v1081, %v1094
    %1096 = vdwg.mxu0
    %1097 = vmatpush.bf16.msra.mxu0 %v760
    %1098 = vmatpush.bf16.msra.mxu0 %v757
    %1099 = vmatpush.bf16.msra.mxu0 %v754
    %1100 = vmatpush.bf16.msra.mxu0 %v751
    %1101 = vmatpush.bf16.msra.mxu0 %v748
    %1102 = vmatpush.bf16.msra.mxu0 %v745
    %1103 = vmatpush.bf16.msra.mxu0 %v742
    %1104 = vmatpush.bf16.msra.mxu0 %v739
    %1105 = vmatmul.bf16.gmra.mxu0 %v281
    %v1106 = vpop.f32.mrf.mxu0
    %v1107 = vadd.f32 %v1093, %v1106
    %v1108 = vpop.f32.mrf.mxu0
    %v1109 = vadd.f32 %v1095, %v1108
    %1110 = vdwg.mxu0
    %1111 = vmatpush.bf16.msra.mxu0 %v784
    %1112 = vmatpush.bf16.msra.mxu0 %v781
    %1113 = vmatpush.bf16.msra.mxu0 %v778
    %1114 = vmatpush.bf16.msra.mxu0 %v775
    %1115 = vmatpush.bf16.msra.mxu0 %v772
    %1116 = vmatpush.bf16.msra.mxu0 %v769
    %1117 = vmatpush.bf16.msra.mxu0 %v766
    %1118 = vmatpush.bf16.msra.mxu0 %v763
    %1119 = vmatmul.bf16.gmra.mxu0 %v282
    %v1120 = vpop.f32.mrf.mxu0
    %v1121 = vadd.f32 %v1107, %v1120
    %v1122 = vpop.f32.mrf.mxu0
    %v1123 = vadd.f32 %v1109, %v1122
    %1124 = vdwg.mxu0
    %1125 = vmatpush.bf16.msra.mxu0 %v808
    %1126 = vmatpush.bf16.msra.mxu0 %v805
    %1127 = vmatpush.bf16.msra.mxu0 %v802
    %1128 = vmatpush.bf16.msra.mxu0 %v799
    %1129 = vmatpush.bf16.msra.mxu0 %v796
    %1130 = vmatpush.bf16.msra.mxu0 %v793
    %1131 = vmatpush.bf16.msra.mxu0 %v790
    %1132 = vmatpush.bf16.msra.mxu0 %v787
    %1133 = vmatmul.bf16.gmra.mxu0 %v283
    %v1134 = vpop.f32.mrf.mxu0
    %v1135 = vadd.f32 %v1121, %v1134
    %v1136 = vpop.f32.mrf.mxu0
    %v1137 = vadd.f32 %v1123, %v1136
    %1138 = vdwg.mxu0
    %v1139 = vmax.f32 %v995, 0.0
    %v1140 = vmax.f32 %v1065, 0.0
    %v1141 = vmax.f32 %v1135, 0.0
    %v1142 = vmax.f32 %v997, 0.0
    %v1143 = vmax.f32 %v1067, 0.0
    %v1144 = vmax.f32 %v1137, 0.0
    %v1145 = vpack.c.bf16 %v1142, %v1139
    %v1146 = vpack.c.bf16 %v1143, %v1140
    %v1147 = vpack.c.bf16 %v1144, %v1141
    %v1148 = vld [vmem:[#allocation4] sm:$0xff]
    %v1149 = vld [vmem:[#allocation4 + $0x8] sm:$0xff]
    %v1150 = vld [vmem:[#allocation4 + $0x10] sm:$0xff]
    %v1151 = vld [vmem:[#allocation4 + $0x18] sm:$0xff]
    %v1152 = vld [vmem:[#allocation4 + $0x20] sm:$0xff]
    %v1153 = vld [vmem:[#allocation4 + $0x28] sm:$0xff]
    %v1154 = vld [vmem:[#allocation4 + $0x30] sm:$0xff]
    %v1155 = vld [vmem:[#allocation4 + $0x38] sm:$0xff]
    %v1156 = vld [vmem:[#allocation4 + $0x40] sm:$0xff]
    %v1157 = vld [vmem:[#allocation4 + $0x48] sm:$0xff]
    %v1158 = vld [vmem:[#allocation4 + $0x50] sm:$0xff]
    %v1159 = vld [vmem:[#allocation4 + $0x58] sm:$0xff]
    %v1160 = vld [vmem:[#allocation4 + $0x60] sm:$0xff]
    %v1161 = vld [vmem:[#allocation4 + $0x68] sm:$0xff]
    %v1162 = vld [vmem:[#allocation4 + $0x70] sm:$0xff]
    %v1163 = vld [vmem:[#allocation4 + $0x78] sm:$0xff]
    %v1164 = vld [vmem:[#allocation4 + $0x80] sm:$0xff]
    %v1165 = vld [vmem:[#allocation4 + $0x88] sm:$0xff]
    %v1166 = vld [vmem:[#allocation4 + $0x90] sm:$0xff]
    %v1167 = vld [vmem:[#allocation4 + $0x98] sm:$0xff]
    %v1168 = vld [vmem:[#allocation4 + $0xa0] sm:$0xff]
    %v1169 = vld [vmem:[#allocation4 + $0xa8] sm:$0xff]
    %v1170 = vld [vmem:[#allocation4 + $0xb0] sm:$0xff]
    %v1171 = vld [vmem:[#allocation4 + $0xb8] sm:$0xff]
    %v1172 = vld [vmem:[#allocation4 + $0xc0] sm:$0xff]
    %v1173 = vld [vmem:[#allocation4 + $0xc8] sm:$0xff]
    %v1174 = vld [vmem:[#allocation4 + $0xd0] sm:$0xff]
    %v1175 = vld [vmem:[#allocation4 + $0xd8] sm:$0xff]
    %v1176 = vld [vmem:[#allocation4 + $0xe0] sm:$0xff]
    %v1177 = vld [vmem:[#allocation4 + $0xe8] sm:$0xff]
    %v1178 = vld [vmem:[#allocation4 + $0xf0] sm:$0xff]
    %v1179 = vld [vmem:[#allocation4 + $0xf8] sm:$0xff]
    %v1180 = vld [vmem:[#allocation4 + $0x100] sm:$0xff]
    %v1181 = vld [vmem:[#allocation4 + $0x108] sm:$0xff]
    %v1182 = vld [vmem:[#allocation4 + $0x110] sm:$0xff]
    %v1183 = vld [vmem:[#allocation4 + $0x118] sm:$0xff]
    %v1184 = vld [vmem:[#allocation4 + $0x120] sm:$0xff]
    %v1185 = vld [vmem:[#allocation4 + $0x128] sm:$0xff]
    %v1186 = vld [vmem:[#allocation4 + $0x130] sm:$0xff]
    %v1187 = vld [vmem:[#allocation4 + $0x138] sm:$0xff]
    %v1188 = vld [vmem:[#allocation4 + $0x140] sm:$0xff]
    %v1189 = vld [vmem:[#allocation4 + $0x148] sm:$0xff]
    %v1190 = vld [vmem:[#allocation4 + $0x150] sm:$0xff]
    %v1191 = vld [vmem:[#allocation4 + $0x158] sm:$0xff]
    %v1192 = vld [vmem:[#allocation4 + $0x160] sm:$0xff]
    %v1193 = vld [vmem:[#allocation4 + $0x168] sm:$0xff]
    %v1194 = vld [vmem:[#allocation4 + $0x170] sm:$0xff]
    %v1195 = vld [vmem:[#allocation4 + $0x178] sm:$0xff]
    %v1196 = vld [vmem:[#allocation4 + $0x180] sm:$0xff]
    %v1197 = vld [vmem:[#allocation4 + $0x188] sm:$0xff]
    %v1198 = vld [vmem:[#allocation4 + $0x190] sm:$0xff]
    %v1199 = vld [vmem:[#allocation4 + $0x198] sm:$0xff]
    %v1200 = vld [vmem:[#allocation4 + $0x1a0] sm:$0xff]
    %v1201 = vld [vmem:[#allocation4 + $0x1a8] sm:$0xff]
    %v1202 = vld [vmem:[#allocation4 + $0x1b0] sm:$0xff]
    %v1203 = vld [vmem:[#allocation4 + $0x1b8] sm:$0xff]
    %v1204 = vld [vmem:[#allocation4 + $0x1c0] sm:$0xff]
    %v1205 = vld [vmem:[#allocation4 + $0x1c8] sm:$0xff]
    %v1206 = vld [vmem:[#allocation4 + $0x1d0] sm:$0xff]
    %v1207 = vld [vmem:[#allocation4 + $0x1d8] sm:$0xff]
    %v1208 = vld [vmem:[#allocation4 + $0x1e0] sm:$0xff]
    %v1209 = vld [vmem:[#allocation4 + $0x1e8] sm:$0xff]
    %v1210 = vld [vmem:[#allocation4 + $0x1f0] sm:$0xff]
    %v1211 = vld [vmem:[#allocation4 + $0x1f8] sm:$0xff]
    %v1212 = vld [vmem:[#allocation4 + $0x200] sm:$0xff]
    %v1213 = vld [vmem:[#allocation4 + $0x208] sm:$0xff]
    %v1214 = vld [vmem:[#allocation4 + $0x210] sm:$0xff]
    %v1215 = vld [vmem:[#allocation4 + $0x218] sm:$0xff]
    %v1216 = vld [vmem:[#allocation4 + $0x220] sm:$0xff]
    %v1217 = vld [vmem:[#allocation4 + $0x228] sm:$0xff]
    %v1218 = vld [vmem:[#allocation4 + $0x230] sm:$0xff]
    %v1219 = vld [vmem:[#allocation4 + $0x238] sm:$0xff]
    %v1220 = vld [vmem:[#allocation4 + $0x240] sm:$0xff]
    %v1221 = vld [vmem:[#allocation4 + $0x248] sm:$0xff]
    %v1222 = vld [vmem:[#allocation4 + $0x250] sm:$0xff]
    %v1223 = vld [vmem:[#allocation4 + $0x258] sm:$0xff]
    %v1224 = vld [vmem:[#allocation4 + $0x260] sm:$0xff]
    %v1225 = vld [vmem:[#allocation4 + $0x268] sm:$0xff]
    %v1226 = vld [vmem:[#allocation4 + $0x270] sm:$0xff]
    %v1227 = vld [vmem:[#allocation4 + $0x278] sm:$0xff]
    %v1228 = vld [vmem:[#allocation4 + $0x280] sm:$0xff]
    %v1229 = vld [vmem:[#allocation4 + $0x288] sm:$0xff]
    %v1230 = vld [vmem:[#allocation4 + $0x290] sm:$0xff]
    %v1231 = vld [vmem:[#allocation4 + $0x298] sm:$0xff]
    %v1232 = vld [vmem:[#allocation4 + $0x2a0] sm:$0xff]
    %v1233 = vld [vmem:[#allocation4 + $0x2a8] sm:$0xff]
    %v1234 = vld [vmem:[#allocation4 + $0x2b0] sm:$0xff]
    %v1235 = vld [vmem:[#allocation4 + $0x2b8] sm:$0xff]
    %v1236 = vld [vmem:[#allocation4 + $0x2c0] sm:$0xff]
    %v1237 = vld [vmem:[#allocation4 + $0x2c8] sm:$0xff]
    %v1238 = vld [vmem:[#allocation4 + $0x2d0] sm:$0xff]
    %v1239 = vld [vmem:[#allocation4 + $0x2d8] sm:$0xff]
    %v1240 = vld [vmem:[#allocation4 + $0x2e0] sm:$0xff]
    %v1241 = vld [vmem:[#allocation4 + $0x2e8] sm:$0xff]
    %v1242 = vld [vmem:[#allocation4 + $0x2f0] sm:$0xff]
    %v1243 = vld [vmem:[#allocation4 + $0x2f8] sm:$0xff]
    %v1340 = vunpack.c.l.b16 %v1148
    %v1341 = vunpack.c.h.b16 %v1148
    %v1342 = vunpack.c.l.b16 %v1149
    %v1343 = vunpack.c.h.b16 %v1149
    %v1344 = vunpack.c.l.b16 %v1150
    %v1345 = vunpack.c.h.b16 %v1150
    %v1346 = vunpack.c.l.b16 %v1151
    %v1347 = vunpack.c.h.b16 %v1151
    %v1348 = vunpack.c.l.b16 %v1152
    %v1349 = vunpack.c.h.b16 %v1152
    %v1350 = vunpack.c.l.b16 %v1153
    %v1351 = vunpack.c.h.b16 %v1153
    %v1352 = vunpack.c.l.b16 %v1154
    %v1353 = vunpack.c.h.b16 %v1154
    %v1354 = vunpack.c.l.b16 %v1155
    %v1355 = vunpack.c.h.b16 %v1155
    %v1356 = vunpack.c.l.b16 %v1156
    %v1357 = vunpack.c.h.b16 %v1156
    %v1358 = vunpack.c.l.b16 %v1157
    %v1359 = vunpack.c.h.b16 %v1157
    %v1360 = vunpack.c.l.b16 %v1158
    %v1361 = vunpack.c.h.b16 %v1158
    %v1362 = vunpack.c.l.b16 %v1159
    %v1363 = vunpack.c.h.b16 %v1159
    %v1364 = vunpack.c.l.b16 %v1160
    %v1365 = vunpack.c.h.b16 %v1160
    %v1366 = vunpack.c.l.b16 %v1161
    %v1367 = vunpack.c.h.b16 %v1161
    %v1368 = vunpack.c.l.b16 %v1162
    %v1369 = vunpack.c.h.b16 %v1162
    %v1370 = vunpack.c.l.b16 %v1163
    %v1371 = vunpack.c.h.b16 %v1163
    %v1372 = vunpack.c.l.b16 %v1164
    %v1373 = vunpack.c.h.b16 %v1164
    %v1374 = vunpack.c.l.b16 %v1165
    %v1375 = vunpack.c.h.b16 %v1165
    %v1376 = vunpack.c.l.b16 %v1166
    %v1377 = vunpack.c.h.b16 %v1166
    %v1378 = vunpack.c.l.b16 %v1167
    %v1379 = vunpack.c.h.b16 %v1167
    %v1380 = vunpack.c.l.b16 %v1168
    %v1381 = vunpack.c.h.b16 %v1168
    %v1382 = vunpack.c.l.b16 %v1169
    %v1383 = vunpack.c.h.b16 %v1169
    %v1384 = vunpack.c.l.b16 %v1170
    %v1385 = vunpack.c.h.b16 %v1170
    %v1386 = vunpack.c.l.b16 %v1171
    %v1387 = vunpack.c.h.b16 %v1171
    %v1388 = vunpack.c.l.b16 %v1172
    %v1389 = vunpack.c.h.b16 %v1172
    %v1390 = vunpack.c.l.b16 %v1173
    %v1391 = vunpack.c.h.b16 %v1173
    %v1392 = vunpack.c.l.b16 %v1174
    %v1393 = vunpack.c.h.b16 %v1174
    %v1394 = vunpack.c.l.b16 %v1175
    %v1395 = vunpack.c.h.b16 %v1175
    %v1396 = vunpack.c.l.b16 %v1176
    %v1397 = vunpack.c.h.b16 %v1176
    %v1398 = vunpack.c.l.b16 %v1177
    %v1399 = vunpack.c.h.b16 %v1177
    %v1400 = vunpack.c.l.b16 %v1178
    %v1401 = vunpack.c.h.b16 %v1178
    %v1402 = vunpack.c.l.b16 %v1179
    %v1403 = vunpack.c.h.b16 %v1179
    %v1404 = vunpack.c.l.b16 %v1180
    %v1405 = vunpack.c.h.b16 %v1180
    %v1406 = vunpack.c.l.b16 %v1181
    %v1407 = vunpack.c.h.b16 %v1181
    %v1408 = vunpack.c.l.b16 %v1182
    %v1409 = vunpack.c.h.b16 %v1182
    %v1410 = vunpack.c.l.b16 %v1183
    %v1411 = vunpack.c.h.b16 %v1183
    %v1412 = vunpack.c.l.b16 %v1184
    %v1413 = vunpack.c.h.b16 %v1184
    %v1414 = vunpack.c.l.b16 %v1185
    %v1415 = vunpack.c.h.b16 %v1185
    %v1416 = vunpack.c.l.b16 %v1186
    %v1417 = vunpack.c.h.b16 %v1186
    %v1418 = vunpack.c.l.b16 %v1187
    %v1419 = vunpack.c.h.b16 %v1187
    %v1420 = vunpack.c.l.b16 %v1188
    %v1421 = vunpack.c.h.b16 %v1188
    %v1422 = vunpack.c.l.b16 %v1189
    %v1423 = vunpack.c.h.b16 %v1189
    %v1424 = vunpack.c.l.b16 %v1190
    %v1425 = vunpack.c.h.b16 %v1190
    %v1426 = vunpack.c.l.b16 %v1191
    %v1427 = vunpack.c.h.b16 %v1191
    %v1428 = vunpack.c.l.b16 %v1192
    %v1429 = vunpack.c.h.b16 %v1192
    %v1430 = vunpack.c.l.b16 %v1193
    %v1431 = vunpack.c.h.b16 %v1193
    %v1432 = vunpack.c.l.b16 %v1194
    %v1433 = vunpack.c.h.b16 %v1194
    %v1434 = vunpack.c.l.b16 %v1195
    %v1435 = vunpack.c.h.b16 %v1195
    %v1436 = vunpack.c.l.b16 %v1196
    %v1437 = vunpack.c.h.b16 %v1196
    %v1438 = vunpack.c.l.b16 %v1197
    %v1439 = vunpack.c.h.b16 %v1197
    %v1440 = vunpack.c.l.b16 %v1198
    %v1441 = vunpack.c.h.b16 %v1198
    %v1442 = vunpack.c.l.b16 %v1199
    %v1443 = vunpack.c.h.b16 %v1199
    %v1444 = vunpack.c.l.b16 %v1200
    %v1445 = vunpack.c.h.b16 %v1200
    %v1446 = vunpack.c.l.b16 %v1201
    %v1447 = vunpack.c.h.b16 %v1201
    %v1448 = vunpack.c.l.b16 %v1202
    %v1449 = vunpack.c.h.b16 %v1202
    %v1450 = vunpack.c.l.b16 %v1203
    %v1451 = vunpack.c.h.b16 %v1203
    %v1452 = vunpack.c.l.b16 %v1204
    %v1453 = vunpack.c.h.b16 %v1204
    %v1454 = vunpack.c.l.b16 %v1205
    %v1455 = vunpack.c.h.b16 %v1205
    %v1456 = vunpack.c.l.b16 %v1206
    %v1457 = vunpack.c.h.b16 %v1206
    %v1458 = vunpack.c.l.b16 %v1207
    %v1459 = vunpack.c.h.b16 %v1207
    %v1460 = vunpack.c.l.b16 %v1208
    %v1461 = vunpack.c.h.b16 %v1208
    %v1462 = vunpack.c.l.b16 %v1209
    %v1463 = vunpack.c.h.b16 %v1209
    %v1464 = vunpack.c.l.b16 %v1210
    %v1465 = vunpack.c.h.b16 %v1210
    %v1466 = vunpack.c.l.b16 %v1211
    %v1467 = vunpack.c.h.b16 %v1211
    %v1468 = vunpack.c.l.b16 %v1212
    %v1469 = vunpack.c.h.b16 %v1212
    %v1470 = vunpack.c.l.b16 %v1213
    %v1471 = vunpack.c.h.b16 %v1213
    %v1472 = vunpack.c.l.b16 %v1214
    %v1473 = vunpack.c.h.b16 %v1214
    %v1474 = vunpack.c.l.b16 %v1215
    %v1475 = vunpack.c.h.b16 %v1215
    %v1476 = vunpack.c.l.b16 %v1216
    %v1477 = vunpack.c.h.b16 %v1216
    %v1478 = vunpack.c.l.b16 %v1217
    %v1479 = vunpack.c.h.b16 %v1217
    %v1480 = vunpack.c.l.b16 %v1218
    %v1481 = vunpack.c.h.b16 %v1218
    %v1482 = vunpack.c.l.b16 %v1219
    %v1483 = vunpack.c.h.b16 %v1219
    %v1484 = vunpack.c.l.b16 %v1220
    %v1485 = vunpack.c.h.b16 %v1220
    %v1486 = vunpack.c.l.b16 %v1221
    %v1487 = vunpack.c.h.b16 %v1221
    %v1488 = vunpack.c.l.b16 %v1222
    %v1489 = vunpack.c.h.b16 %v1222
    %v1490 = vunpack.c.l.b16 %v1223
    %v1491 = vunpack.c.h.b16 %v1223
    %v1492 = vunpack.c.l.b16 %v1224
    %v1493 = vunpack.c.h.b16 %v1224
    %v1494 = vunpack.c.l.b16 %v1225
    %v1495 = vunpack.c.h.b16 %v1225
    %v1496 = vunpack.c.l.b16 %v1226
    %v1497 = vunpack.c.h.b16 %v1226
    %v1498 = vunpack.c.l.b16 %v1227
    %v1499 = vunpack.c.h.b16 %v1227
    %v1500 = vunpack.c.l.b16 %v1228
    %v1501 = vunpack.c.h.b16 %v1228
    %v1502 = vunpack.c.l.b16 %v1229
    %v1503 = vunpack.c.h.b16 %v1229
    %v1504 = vunpack.c.l.b16 %v1230
    %v1505 = vunpack.c.h.b16 %v1230
    %v1506 = vunpack.c.l.b16 %v1231
    %v1507 = vunpack.c.h.b16 %v1231
    %v1508 = vunpack.c.l.b16 %v1232
    %v1509 = vunpack.c.h.b16 %v1232
    %v1510 = vunpack.c.l.b16 %v1233
    %v1511 = vunpack.c.h.b16 %v1233
    %v1512 = vunpack.c.l.b16 %v1234
    %v1513 = vunpack.c.h.b16 %v1234
    %v1514 = vunpack.c.l.b16 %v1235
    %v1515 = vunpack.c.h.b16 %v1235
    %v1516 = vunpack.c.l.b16 %v1236
    %v1517 = vunpack.c.h.b16 %v1236
    %v1518 = vunpack.c.l.b16 %v1237
    %v1519 = vunpack.c.h.b16 %v1237
    %v1520 = vunpack.c.l.b16 %v1238
    %v1521 = vunpack.c.h.b16 %v1238
    %v1522 = vunpack.c.l.b16 %v1239
    %v1523 = vunpack.c.h.b16 %v1239
    %v1524 = vunpack.c.l.b16 %v1240
    %v1525 = vunpack.c.h.b16 %v1240
    %v1526 = vunpack.c.l.b16 %v1241
    %v1527 = vunpack.c.h.b16 %v1241
    %v1528 = vunpack.c.l.b16 %v1242
    %v1529 = vunpack.c.h.b16 %v1242
    %v1530 = vunpack.c.l.b16 %v1243
    %v1531 = vunpack.c.h.b16 %v1243
    %v1532 = vpack.c.b16 %v1344, %v1340
    %v1533 = vpack.c.b16 %v1345, %v1341
    %v1534 = vpack.c.b16 %v1346, %v1342
    %v1535 = vpack.c.b16 %v1347, %v1343
    %v1536 = vpack.c.b16 %v1352, %v1348
    %v1537 = vpack.c.b16 %v1353, %v1349
    %v1538 = vpack.c.b16 %v1354, %v1350
    %v1539 = vpack.c.b16 %v1355, %v1351
    %v1540 = vpack.c.b16 %v1360, %v1356
    %v1541 = vpack.c.b16 %v1361, %v1357
    %v1542 = vpack.c.b16 %v1362, %v1358
    %v1543 = vpack.c.b16 %v1363, %v1359
    %v1544 = vpack.c.b16 %v1368, %v1364
    %v1545 = vpack.c.b16 %v1369, %v1365
    %v1546 = vpack.c.b16 %v1370, %v1366
    %v1547 = vpack.c.b16 %v1371, %v1367
    %v1548 = vpack.c.b16 %v1376, %v1372
    %v1549 = vpack.c.b16 %v1377, %v1373
    %v1550 = vpack.c.b16 %v1378, %v1374
    %v1551 = vpack.c.b16 %v1379, %v1375
    %v1552 = vpack.c.b16 %v1384, %v1380
    %v1553 = vpack.c.b16 %v1385, %v1381
    %v1554 = vpack.c.b16 %v1386, %v1382
    %v1555 = vpack.c.b16 %v1387, %v1383
    %v1556 = vpack.c.b16 %v1392, %v1388
    %v1557 = vpack.c.b16 %v1393, %v1389
    %v1558 = vpack.c.b16 %v1394, %v1390
    %v1559 = vpack.c.b16 %v1395, %v1391
    %v1560 = vpack.c.b16 %v1400, %v1396
    %v1561 = vpack.c.b16 %v1401, %v1397
    %v1562 = vpack.c.b16 %v1402, %v1398
    %v1563 = vpack.c.b16 %v1403, %v1399
    %v1564 = vpack.c.b16 %v1408, %v1404
    %v1565 = vpack.c.b16 %v1409, %v1405
    %v1566 = vpack.c.b16 %v1410, %v1406
    %v1567 = vpack.c.b16 %v1411, %v1407
    %v1568 = vpack.c.b16 %v1416, %v1412
    %v1569 = vpack.c.b16 %v1417, %v1413
    %v1570 = vpack.c.b16 %v1418, %v1414
    %v1571 = vpack.c.b16 %v1419, %v1415
    %v1572 = vpack.c.b16 %v1424, %v1420
    %v1573 = vpack.c.b16 %v1425, %v1421
    %v1574 = vpack.c.b16 %v1426, %v1422
    %v1575 = vpack.c.b16 %v1427, %v1423
    %v1576 = vpack.c.b16 %v1432, %v1428
    %v1577 = vpack.c.b16 %v1433, %v1429
    %v1578 = vpack.c.b16 %v1434, %v1430
    %v1579 = vpack.c.b16 %v1435, %v1431
    %v1580 = vpack.c.b16 %v1440, %v1436
    %v1581 = vpack.c.b16 %v1441, %v1437
    %v1582 = vpack.c.b16 %v1442, %v1438
    %v1583 = vpack.c.b16 %v1443, %v1439
    %v1584 = vpack.c.b16 %v1448, %v1444
    %v1585 = vpack.c.b16 %v1449, %v1445
    %v1586 = vpack.c.b16 %v1450, %v1446
    %v1587 = vpack.c.b16 %v1451, %v1447
    %v1588 = vpack.c.b16 %v1456, %v1452
    %v1589 = vpack.c.b16 %v1457, %v1453
    %v1590 = vpack.c.b16 %v1458, %v1454
    %v1591 = vpack.c.b16 %v1459, %v1455
    %v1592 = vpack.c.b16 %v1464, %v1460
    %v1593 = vpack.c.b16 %v1465, %v1461
    %v1594 = vpack.c.b16 %v1466, %v1462
    %v1595 = vpack.c.b16 %v1467, %v1463
    %v1596 = vpack.c.b16 %v1472, %v1468
    %v1597 = vpack.c.b16 %v1473, %v1469
    %v1598 = vpack.c.b16 %v1474, %v1470
    %v1599 = vpack.c.b16 %v1475, %v1471
    %v1600 = vpack.c.b16 %v1480, %v1476
    %v1601 = vpack.c.b16 %v1481, %v1477
    %v1602 = vpack.c.b16 %v1482, %v1478
    %v1603 = vpack.c.b16 %v1483, %v1479
    %v1604 = vpack.c.b16 %v1488, %v1484
    %v1605 = vpack.c.b16 %v1489, %v1485
    %v1606 = vpack.c.b16 %v1490, %v1486
    %v1607 = vpack.c.b16 %v1491, %v1487
    %v1608 = vpack.c.b16 %v1496, %v1492
    %v1609 = vpack.c.b16 %v1497, %v1493
    %v1610 = vpack.c.b16 %v1498, %v1494
    %v1611 = vpack.c.b16 %v1499, %v1495
    %v1612 = vpack.c.b16 %v1504, %v1500
    %v1613 = vpack.c.b16 %v1505, %v1501
    %v1614 = vpack.c.b16 %v1506, %v1502
    %v1615 = vpack.c.b16 %v1507, %v1503
    %v1616 = vpack.c.b16 %v1512, %v1508
    %v1617 = vpack.c.b16 %v1513, %v1509
    %v1618 = vpack.c.b16 %v1514, %v1510
    %v1619 = vpack.c.b16 %v1515, %v1511
    %v1620 = vpack.c.b16 %v1520, %v1516
    %v1621 = vpack.c.b16 %v1521, %v1517
    %v1622 = vpack.c.b16 %v1522, %v1518
    %v1623 = vpack.c.b16 %v1523, %v1519
    %v1624 = vpack.c.b16 %v1528, %v1524
    %v1625 = vpack.c.b16 %v1529, %v1525
    %v1626 = vpack.c.b16 %v1530, %v1526
    %v1627 = vpack.c.b16 %v1531, %v1527
    %1724 = vmatpush.bf16.msra.mxu0 %v1560
    %1725 = vmatpush.bf16.msra.mxu0 %v1556
    %1726 = vmatpush.bf16.msra.mxu0 %v1552
    %1727 = vmatpush.bf16.msra.mxu0 %v1548
    %1728 = vmatpush.bf16.msra.mxu0 %v1544
    %1729 = vmatpush.bf16.msra.mxu0 %v1540
    %1730 = vmatpush.bf16.msra.mxu0 %v1536
    %1731 = vmatpush.bf16.msra.mxu0 %v1532
    %1732 = vmatmul.bf16.gmra.mxu0 %v1145
    %v1733 = vpop.f32.mrf.mxu0
    %v1734 = vadd.f32 0.0, %v1733
    %v1735 = vpop.f32.mrf.mxu0
    %v1736 = vadd.f32 0.0, %v1735
    %1737 = vdwg.mxu0
    %1738 = vmatpush.bf16.msra.mxu0 %v1592
    %1739 = vmatpush.bf16.msra.mxu0 %v1588
    %1740 = vmatpush.bf16.msra.mxu0 %v1584
    %1741 = vmatpush.bf16.msra.mxu0 %v1580
    %1742 = vmatpush.bf16.msra.mxu0 %v1576
    %1743 = vmatpush.bf16.msra.mxu0 %v1572
    %1744 = vmatpush.bf16.msra.mxu0 %v1568
    %1745 = vmatpush.bf16.msra.mxu0 %v1564
    %1746 = vmatmul.bf16.gmra.mxu0 %v1146
    %v1747 = vpop.f32.mrf.mxu0
    %v1748 = vadd.f32 %v1734, %v1747
    %v1749 = vpop.f32.mrf.mxu0
    %v1750 = vadd.f32 %v1736, %v1749
    %1751 = vdwg.mxu0
    %1752 = vmatpush.bf16.msra.mxu0 %v1624
    %1753 = vmatpush.bf16.msra.mxu0 %v1620
    %1754 = vmatpush.bf16.msra.mxu0 %v1616
    %1755 = vmatpush.bf16.msra.mxu0 %v1612
    %1756 = vmatpush.bf16.msra.mxu0 %v1608
    %1757 = vmatpush.bf16.msra.mxu0 %v1604
    %1758 = vmatpush.bf16.msra.mxu0 %v1600
    %1759 = vmatpush.bf16.msra.mxu0 %v1596
    %1760 = vmatmul.bf16.gmra.mxu0 %v1147
    %v1761 = vpop.f32.mrf.mxu0
    %v1762 = vadd.f32 %v1748, %v1761
    %v1763 = vpop.f32.mrf.mxu0
    %v1764 = vadd.f32 %v1750, %v1763
    %1765 = vdwg.mxu0
    %1766 = vmatpush.bf16.msra.mxu0 %v1561
    %1767 = vmatpush.bf16.msra.mxu0 %v1557
    %1768 = vmatpush.bf16.msra.mxu0 %v1553
    %1769 = vmatpush.bf16.msra.mxu0 %v1549
    %1770 = vmatpush.bf16.msra.mxu0 %v1545
    %1771 = vmatpush.bf16.msra.mxu0 %v1541
    %1772 = vmatpush.bf16.msra.mxu0 %v1537
    %1773 = vmatpush.bf16.msra.mxu0 %v1533
    %1774 = vmatmul.bf16.gmra.mxu0 %v1145
    %v1775 = vpop.f32.mrf.mxu0
    %v1776 = vadd.f32 0.0, %v1775
    %v1777 = vpop.f32.mrf.mxu0
    %v1778 = vadd.f32 0.0, %v1777
    %1779 = vdwg.mxu0
    %1780 = vmatpush.bf16.msra.mxu0 %v1593
    %1781 = vmatpush.bf16.msra.mxu0 %v1589
    %1782 = vmatpush.bf16.msra.mxu0 %v1585
    %1783 = vmatpush.bf16.msra.mxu0 %v1581
    %1784 = vmatpush.bf16.msra.mxu0 %v1577
    %1785 = vmatpush.bf16.msra.mxu0 %v1573
    %1786 = vmatpush.bf16.msra.mxu0 %v1569
    %1787 = vmatpush.bf16.msra.mxu0 %v1565
    %1788 = vmatmul.bf16.gmra.mxu0 %v1146
    %v1789 = vpop.f32.mrf.mxu0
    %v1790 = vadd.f32 %v1776, %v1789
    %v1791 = vpop.f32.mrf.mxu0
    %v1792 = vadd.f32 %v1778, %v1791
    %1793 = vdwg.mxu0
    %1794 = vmatpush.bf16.msra.mxu0 %v1625
    %1795 = vmatpush.bf16.msra.mxu0 %v1621
    %1796 = vmatpush.bf16.msra.mxu0 %v1617
    %1797 = vmatpush.bf16.msra.mxu0 %v1613
    %1798 = vmatpush.bf16.msra.mxu0 %v1609
    %1799 = vmatpush.bf16.msra.mxu0 %v1605
    %1800 = vmatpush.bf16.msra.mxu0 %v1601
    %1801 = vmatpush.bf16.msra.mxu0 %v1597
    %1802 = vmatmul.bf16.gmra.mxu0 %v1147
    %v1803 = vpop.f32.mrf.mxu0
    %v1804 = vadd.f32 %v1790, %v1803
    %v1805 = vpop.f32.mrf.mxu0
    %v1806 = vadd.f32 %v1792, %v1805
    %1807 = vdwg.mxu0
    %1808 = vmatpush.bf16.msra.mxu0 %v1562
    %1809 = vmatpush.bf16.msra.mxu0 %v1558
    %1810 = vmatpush.bf16.msra.mxu0 %v1554
    %1811 = vmatpush.bf16.msra.mxu0 %v1550
    %1812 = vmatpush.bf16.msra.mxu0 %v1546
    %1813 = vmatpush.bf16.msra.mxu0 %v1542
    %1814 = vmatpush.bf16.msra.mxu0 %v1538
    %1815 = vmatpush.bf16.msra.mxu0 %v1534
    %1816 = vmatmul.bf16.gmra.mxu0 %v1145
    %v1817 = vpop.f32.mrf.mxu0
    %v1818 = vadd.f32 0.0, %v1817
    %v1819 = vpop.f32.mrf.mxu0
    %v1820 = vadd.f32 0.0, %v1819
    %1821 = vdwg.mxu0
    %1822 = vmatpush.bf16.msra.mxu0 %v1594
    %1823 = vmatpush.bf16.msra.mxu0 %v1590
    %1824 = vmatpush.bf16.msra.mxu0 %v1586
    %1825 = vmatpush.bf16.msra.mxu0 %v1582
    %1826 = vmatpush.bf16.msra.mxu0 %v1578
    %1827 = vmatpush.bf16.msra.mxu0 %v1574
    %1828 = vmatpush.bf16.msra.mxu0 %v1570
    %1829 = vmatpush.bf16.msra.mxu0 %v1566
    %1830 = vmatmul.bf16.gmra.mxu0 %v1146
    %v1831 = vpop.f32.mrf.mxu0
    %v1832 = vadd.f32 %v1818, %v1831
    %v1833 = vpop.f32.mrf.mxu0
    %v1834 = vadd.f32 %v1820, %v1833
    %1835 = vdwg.mxu0
    %1836 = vmatpush.bf16.msra.mxu0 %v1626
    %1837 = vmatpush.bf16.msra.mxu0 %v1622
    %1838 = vmatpush.bf16.msra.mxu0 %v1618
    %1839 = vmatpush.bf16.msra.mxu0 %v1614
    %1840 = vmatpush.bf16.msra.mxu0 %v1610
    %1841 = vmatpush.bf16.msra.mxu0 %v1606
    %1842 = vmatpush.bf16.msra.mxu0 %v1602
    %1843 = vmatpush.bf16.msra.mxu0 %v1598
    %1844 = vmatmul.bf16.gmra.mxu0 %v1147
    %v1845 = vpop.f32.mrf.mxu0
    %v1846 = vadd.f32 %v1832, %v1845
    %v1847 = vpop.f32.mrf.mxu0
    %v1848 = vadd.f32 %v1834, %v1847
    %1849 = vdwg.mxu0
    %1850 = vmatpush.bf16.msra.mxu0 %v1563
    %1851 = vmatpush.bf16.msra.mxu0 %v1559
    %1852 = vmatpush.bf16.msra.mxu0 %v1555
    %1853 = vmatpush.bf16.msra.mxu0 %v1551
    %1854 = vmatpush.bf16.msra.mxu0 %v1547
    %1855 = vmatpush.bf16.msra.mxu0 %v1543
    %1856 = vmatpush.bf16.msra.mxu0 %v1539
    %1857 = vmatpush.bf16.msra.mxu0 %v1535
    %1858 = vmatmul.bf16.gmra.mxu0 %v1145
    %v1859 = vpop.f32.mrf.mxu0
    %v1860 = vadd.f32 0.0, %v1859
    %v1861 = vpop.f32.mrf.mxu0
    %v1862 = vadd.f32 0.0, %v1861
    %1863 = vdwg.mxu0
    %1864 = vmatpush.bf16.msra.mxu0 %v1595
    %1865 = vmatpush.bf16.msra.mxu0 %v1591
    %1866 = vmatpush.bf16.msra.mxu0 %v1587
    %1867 = vmatpush.bf16.msra.mxu0 %v1583
    %1868 = vmatpush.bf16.msra.mxu0 %v1579
    %1869 = vmatpush.bf16.msra.mxu0 %v1575
    %1870 = vmatpush.bf16.msra.mxu0 %v1571
    %1871 = vmatpush.bf16.msra.mxu0 %v1567
    %1872 = vmatmul.bf16.gmra.mxu0 %v1146
    %v1873 = vpop.f32.mrf.mxu0
    %v1874 = vadd.f32 %v1860, %v1873
    %v1875 = vpop.f32.mrf.mxu0
    %v1876 = vadd.f32 %v1862, %v1875
    %1877 = vdwg.mxu0
    %1878 = vmatpush.bf16.msra.mxu0 %v1627
    %1879 = vmatpush.bf16.msra.mxu0 %v1623
    %1880 = vmatpush.bf16.msra.mxu0 %v1619
    %1881 = vmatpush.bf16.msra.mxu0 %v1615
    %1882 = vmatpush.bf16.msra.mxu0 %v1611
    %1883 = vmatpush.bf16.msra.mxu0 %v1607
    %1884 = vmatpush.bf16.msra.mxu0 %v1603
    %1885 = vmatpush.bf16.msra.mxu0 %v1599
    %1886 = vmatmul.bf16.gmra.mxu0 %v1147
    %v1887 = vpop.f32.mrf.mxu0
    %v1888 = vadd.f32 %v1874, %v1887
    %v1889 = vpop.f32.mrf.mxu0
    %v1890 = vadd.f32 %v1876, %v1889
    %1891 = vdwg.mxu0
    %v1892 = vadd.f32 %v995, %v1762
    %v1893 = vadd.f32 %v1065, %v1804
    %v1894 = vadd.f32 %v1135, %v1846
    %v1895 = vadd.f32 %v997, %v1764
    %v1896 = vadd.f32 %v1067, %v1806
    %v1897 = vadd.f32 %v1137, %v1848
    %v1898 = vmax.f32 %v1892, 0.0
    %v1899 = vmax.f32 %v1893, 0.0
    %v1900 = vmax.f32 %v1894, 0.0
    %v1901 = vmax.f32 %v1895, 0.0
    %v1902 = vmax.f32 %v1896, 0.0
    %v1903 = vmax.f32 %v1897, 0.0
    %v1904 = vpack.c.bf16 %v1901, %v1898
    %v1905 = vpack.c.bf16 %v1902, %v1899
    %v1906 = vpack.c.bf16 %v1903, %v1900
    %v1907 = vld [vmem:[#allocation6] sm:$0xff]
    %v1908 = vld [vmem:[#allocation6 + $0x8] sm:$0xff]
    %v1909 = vld [vmem:[#allocation6 + $0x10] sm:$0xff]
    %v1910 = vld [vmem:[#allocation6 + $0x18] sm:$0xff]
    %v1911 = vld [vmem:[#allocation6 + $0x20] sm:$0xff]
    %v1912 = vld [vmem:[#allocation6 + $0x28] sm:$0xff]
    %v1913 = vld [vmem:[#allocation6 + $0x30] sm:$0xff]
    %v1914 = vld [vmem:[#allocation6 + $0x38] sm:$0xff]
    %v1915 = vld [vmem:[#allocation6 + $0x40] sm:$0xff]
    %v1916 = vld [vmem:[#allocation6 + $0x48] sm:$0xff]
    %v1917 = vld [vmem:[#allocation6 + $0x50] sm:$0xff]
    %v1918 = vld [vmem:[#allocation6 + $0x58] sm:$0xff]
    %v1919 = vld [vmem:[#allocation6 + $0x60] sm:$0xff]
    %v1920 = vld [vmem:[#allocation6 + $0x68] sm:$0xff]
    %v1921 = vld [vmem:[#allocation6 + $0x70] sm:$0xff]
    %v1922 = vld [vmem:[#allocation6 + $0x78] sm:$0xff]
    %v1923 = vld [vmem:[#allocation6 + $0x80] sm:$0xff]
    %v1924 = vld [vmem:[#allocation6 + $0x88] sm:$0xff]
    %v1925 = vld [vmem:[#allocation6 + $0x90] sm:$0xff]
    %v1926 = vld [vmem:[#allocation6 + $0x98] sm:$0xff]
    %v1927 = vld [vmem:[#allocation6 + $0xa0] sm:$0xff]
    %v1928 = vld [vmem:[#allocation6 + $0xa8] sm:$0xff]
    %v1929 = vld [vmem:[#allocation6 + $0xb0] sm:$0xff]
    %v1930 = vld [vmem:[#allocation6 + $0xb8] sm:$0xff]
    %v1931 = vld [vmem:[#allocation6 + $0xc0] sm:$0xff]
    %v1932 = vld [vmem:[#allocation6 + $0xc8] sm:$0xff]
    %v1933 = vld [vmem:[#allocation6 + $0xd0] sm:$0xff]
    %v1934 = vld [vmem:[#allocation6 + $0xd8] sm:$0xff]
    %v1935 = vld [vmem:[#allocation6 + $0xe0] sm:$0xff]
    %v1936 = vld [vmem:[#allocation6 + $0xe8] sm:$0xff]
    %v1937 = vld [vmem:[#allocation6 + $0xf0] sm:$0xff]
    %v1938 = vld [vmem:[#allocation6 + $0xf8] sm:$0xff]
    %v1939 = vld [vmem:[#allocation6 + $0x100] sm:$0xff]
    %v1940 = vld [vmem:[#allocation6 + $0x108] sm:$0xff]
    %v1941 = vld [vmem:[#allocation6 + $0x110] sm:$0xff]
    %v1942 = vld [vmem:[#allocation6 + $0x118] sm:$0xff]
    %v1943 = vld [vmem:[#allocation6 + $0x120] sm:$0xff]
    %v1944 = vld [vmem:[#allocation6 + $0x128] sm:$0xff]
    %v1945 = vld [vmem:[#allocation6 + $0x130] sm:$0xff]
    %v1946 = vld [vmem:[#allocation6 + $0x138] sm:$0xff]
    %v1947 = vld [vmem:[#allocation6 + $0x140] sm:$0xff]
    %v1948 = vld [vmem:[#allocation6 + $0x148] sm:$0xff]
    %v1949 = vld [vmem:[#allocation6 + $0x150] sm:$0xff]
    %v1950 = vld [vmem:[#allocation6 + $0x158] sm:$0xff]
    %v1951 = vld [vmem:[#allocation6 + $0x160] sm:$0xff]
    %v1952 = vld [vmem:[#allocation6 + $0x168] sm:$0xff]
    %v1953 = vld [vmem:[#allocation6 + $0x170] sm:$0xff]
    %v1954 = vld [vmem:[#allocation6 + $0x178] sm:$0xff]
    %v1955 = vld [vmem:[#allocation6 + $0x180] sm:$0xff]
    %v1956 = vld [vmem:[#allocation6 + $0x188] sm:$0xff]
    %v1957 = vld [vmem:[#allocation6 + $0x190] sm:$0xff]
    %v1958 = vld [vmem:[#allocation6 + $0x198] sm:$0xff]
    %v1959 = vld [vmem:[#allocation6 + $0x1a0] sm:$0xff]
    %v1960 = vld [vmem:[#allocation6 + $0x1a8] sm:$0xff]
    %v1961 = vld [vmem:[#allocation6 + $0x1b0] sm:$0xff]
    %v1962 = vld [vmem:[#allocation6 + $0x1b8] sm:$0xff]
    %v1963 = vld [vmem:[#allocation6 + $0x1c0] sm:$0xff]
    %v1964 = vld [vmem:[#allocation6 + $0x1c8] sm:$0xff]
    %v1965 = vld [vmem:[#allocation6 + $0x1d0] sm:$0xff]
    %v1966 = vld [vmem:[#allocation6 + $0x1d8] sm:$0xff]
    %v1967 = vld [vmem:[#allocation6 + $0x1e0] sm:$0xff]
    %v1968 = vld [vmem:[#allocation6 + $0x1e8] sm:$0xff]
    %v1969 = vld [vmem:[#allocation6 + $0x1f0] sm:$0xff]
    %v1970 = vld [vmem:[#allocation6 + $0x1f8] sm:$0xff]
    %v1971 = vld [vmem:[#allocation6 + $0x200] sm:$0xff]
    %v1972 = vld [vmem:[#allocation6 + $0x208] sm:$0xff]
    %v1973 = vld [vmem:[#allocation6 + $0x210] sm:$0xff]
    %v1974 = vld [vmem:[#allocation6 + $0x218] sm:$0xff]
    %v1975 = vld [vmem:[#allocation6 + $0x220] sm:$0xff]
    %v1976 = vld [vmem:[#allocation6 + $0x228] sm:$0xff]
    %v1977 = vld [vmem:[#allocation6 + $0x230] sm:$0xff]
    %v1978 = vld [vmem:[#allocation6 + $0x238] sm:$0xff]
    %v1979 = vld [vmem:[#allocation6 + $0x240] sm:$0xff]
    %v1980 = vld [vmem:[#allocation6 + $0x248] sm:$0xff]
    %v1981 = vld [vmem:[#allocation6 + $0x250] sm:$0xff]
    %v1982 = vld [vmem:[#allocation6 + $0x258] sm:$0xff]
    %v1983 = vld [vmem:[#allocation6 + $0x260] sm:$0xff]
    %v1984 = vld [vmem:[#allocation6 + $0x268] sm:$0xff]
    %v1985 = vld [vmem:[#allocation6 + $0x270] sm:$0xff]
    %v1986 = vld [vmem:[#allocation6 + $0x278] sm:$0xff]
    %v1987 = vld [vmem:[#allocation6 + $0x280] sm:$0xff]
    %v1988 = vld [vmem:[#allocation6 + $0x288] sm:$0xff]
    %v1989 = vld [vmem:[#allocation6 + $0x290] sm:$0xff]
    %v1990 = vld [vmem:[#allocation6 + $0x298] sm:$0xff]
    %v1991 = vld [vmem:[#allocation6 + $0x2a0] sm:$0xff]
    %v1992 = vld [vmem:[#allocation6 + $0x2a8] sm:$0xff]
    %v1993 = vld [vmem:[#allocation6 + $0x2b0] sm:$0xff]
    %v1994 = vld [vmem:[#allocation6 + $0x2b8] sm:$0xff]
    %v1995 = vld [vmem:[#allocation6 + $0x2c0] sm:$0xff]
    %v1996 = vld [vmem:[#allocation6 + $0x2c8] sm:$0xff]
    %v1997 = vld [vmem:[#allocation6 + $0x2d0] sm:$0xff]
    %v1998 = vld [vmem:[#allocation6 + $0x2d8] sm:$0xff]
    %v1999 = vld [vmem:[#allocation6 + $0x2e0] sm:$0xff]
    %v2000 = vld [vmem:[#allocation6 + $0x2e8] sm:$0xff]
    %v2001 = vld [vmem:[#allocation6 + $0x2f0] sm:$0xff]
    %v2002 = vld [vmem:[#allocation6 + $0x2f8] sm:$0xff]
    %v2099 = vunpack.c.l.b16 %v1907
    %v2100 = vunpack.c.h.b16 %v1907
    %v2101 = vunpack.c.l.b16 %v1908
    %v2102 = vunpack.c.h.b16 %v1908
    %v2103 = vunpack.c.l.b16 %v1909
    %v2104 = vunpack.c.h.b16 %v1909
    %v2105 = vunpack.c.l.b16 %v1910
    %v2106 = vunpack.c.h.b16 %v1910
    %v2107 = vunpack.c.l.b16 %v1911
    %v2108 = vunpack.c.h.b16 %v1911
    %v2109 = vunpack.c.l.b16 %v1912
    %v2110 = vunpack.c.h.b16 %v1912
    %v2111 = vunpack.c.l.b16 %v1913
    %v2112 = vunpack.c.h.b16 %v1913
    %v2113 = vunpack.c.l.b16 %v1914
    %v2114 = vunpack.c.h.b16 %v1914
    %v2115 = vunpack.c.l.b16 %v1915
    %v2116 = vunpack.c.h.b16 %v1915
    %v2117 = vunpack.c.l.b16 %v1916
    %v2118 = vunpack.c.h.b16 %v1916
    %v2119 = vunpack.c.l.b16 %v1917
    %v2120 = vunpack.c.h.b16 %v1917
    %v2121 = vunpack.c.l.b16 %v1918
    %v2122 = vunpack.c.h.b16 %v1918
    %v2123 = vunpack.c.l.b16 %v1919
    %v2124 = vunpack.c.h.b16 %v1919
    %v2125 = vunpack.c.l.b16 %v1920
    %v2126 = vunpack.c.h.b16 %v1920
    %v2127 = vunpack.c.l.b16 %v1921
    %v2128 = vunpack.c.h.b16 %v1921
    %v2129 = vunpack.c.l.b16 %v1922
    %v2130 = vunpack.c.h.b16 %v1922
    %v2131 = vunpack.c.l.b16 %v1923
    %v2132 = vunpack.c.h.b16 %v1923
    %v2133 = vunpack.c.l.b16 %v1924
    %v2134 = vunpack.c.h.b16 %v1924
    %v2135 = vunpack.c.l.b16 %v1925
    %v2136 = vunpack.c.h.b16 %v1925
    %v2137 = vunpack.c.l.b16 %v1926
    %v2138 = vunpack.c.h.b16 %v1926
    %v2139 = vunpack.c.l.b16 %v1927
    %v2140 = vunpack.c.h.b16 %v1927
    %v2141 = vunpack.c.l.b16 %v1928
    %v2142 = vunpack.c.h.b16 %v1928
    %v2143 = vunpack.c.l.b16 %v1929
    %v2144 = vunpack.c.h.b16 %v1929
    %v2145 = vunpack.c.l.b16 %v1930
    %v2146 = vunpack.c.h.b16 %v1930
    %v2147 = vunpack.c.l.b16 %v1931
    %v2148 = vunpack.c.h.b16 %v1931
    %v2149 = vunpack.c.l.b16 %v1932
    %v2150 = vunpack.c.h.b16 %v1932
    %v2151 = vunpack.c.l.b16 %v1933
    %v2152 = vunpack.c.h.b16 %v1933
    %v2153 = vunpack.c.l.b16 %v1934
    %v2154 = vunpack.c.h.b16 %v1934
    %v2155 = vunpack.c.l.b16 %v1935
    %v2156 = vunpack.c.h.b16 %v1935
    %v2157 = vunpack.c.l.b16 %v1936
    %v2158 = vunpack.c.h.b16 %v1936
    %v2159 = vunpack.c.l.b16 %v1937
    %v2160 = vunpack.c.h.b16 %v1937
    %v2161 = vunpack.c.l.b16 %v1938
    %v2162 = vunpack.c.h.b16 %v1938
    %v2163 = vunpack.c.l.b16 %v1939
    %v2164 = vunpack.c.h.b16 %v1939
    %v2165 = vunpack.c.l.b16 %v1940
    %v2166 = vunpack.c.h.b16 %v1940
    %v2167 = vunpack.c.l.b16 %v1941
    %v2168 = vunpack.c.h.b16 %v1941
    %v2169 = vunpack.c.l.b16 %v1942
    %v2170 = vunpack.c.h.b16 %v1942
    %v2171 = vunpack.c.l.b16 %v1943
    %v2172 = vunpack.c.h.b16 %v1943
    %v2173 = vunpack.c.l.b16 %v1944
    %v2174 = vunpack.c.h.b16 %v1944
    %v2175 = vunpack.c.l.b16 %v1945
    %v2176 = vunpack.c.h.b16 %v1945
    %v2177 = vunpack.c.l.b16 %v1946
    %v2178 = vunpack.c.h.b16 %v1946
    %v2179 = vunpack.c.l.b16 %v1947
    %v2180 = vunpack.c.h.b16 %v1947
    %v2181 = vunpack.c.l.b16 %v1948
    %v2182 = vunpack.c.h.b16 %v1948
    %v2183 = vunpack.c.l.b16 %v1949
    %v2184 = vunpack.c.h.b16 %v1949
    %v2185 = vunpack.c.l.b16 %v1950
    %v2186 = vunpack.c.h.b16 %v1950
    %v2187 = vunpack.c.l.b16 %v1951
    %v2188 = vunpack.c.h.b16 %v1951
    %v2189 = vunpack.c.l.b16 %v1952
    %v2190 = vunpack.c.h.b16 %v1952
    %v2191 = vunpack.c.l.b16 %v1953
    %v2192 = vunpack.c.h.b16 %v1953
    %v2193 = vunpack.c.l.b16 %v1954
    %v2194 = vunpack.c.h.b16 %v1954
    %v2195 = vunpack.c.l.b16 %v1955
    %v2196 = vunpack.c.h.b16 %v1955
    %v2197 = vunpack.c.l.b16 %v1956
    %v2198 = vunpack.c.h.b16 %v1956
    %v2199 = vunpack.c.l.b16 %v1957
    %v2200 = vunpack.c.h.b16 %v1957
    %v2201 = vunpack.c.l.b16 %v1958
    %v2202 = vunpack.c.h.b16 %v1958
    %v2203 = vunpack.c.l.b16 %v1959
    %v2204 = vunpack.c.h.b16 %v1959
    %v2205 = vunpack.c.l.b16 %v1960
    %v2206 = vunpack.c.h.b16 %v1960
    %v2207 = vunpack.c.l.b16 %v1961
    %v2208 = vunpack.c.h.b16 %v1961
    %v2209 = vunpack.c.l.b16 %v1962
    %v2210 = vunpack.c.h.b16 %v1962
    %v2211 = vunpack.c.l.b16 %v1963
    %v2212 = vunpack.c.h.b16 %v1963
    %v2213 = vunpack.c.l.b16 %v1964
    %v2214 = vunpack.c.h.b16 %v1964
    %v2215 = vunpack.c.l.b16 %v1965
    %v2216 = vunpack.c.h.b16 %v1965
    %v2217 = vunpack.c.l.b16 %v1966
    %v2218 = vunpack.c.h.b16 %v1966
    %v2219 = vunpack.c.l.b16 %v1967
    %v2220 = vunpack.c.h.b16 %v1967
    %v2221 = vunpack.c.l.b16 %v1968
    %v2222 = vunpack.c.h.b16 %v1968
    %v2223 = vunpack.c.l.b16 %v1969
    %v2224 = vunpack.c.h.b16 %v1969
    %v2225 = vunpack.c.l.b16 %v1970
    %v2226 = vunpack.c.h.b16 %v1970
    %v2227 = vunpack.c.l.b16 %v1971
    %v2228 = vunpack.c.h.b16 %v1971
    %v2229 = vunpack.c.l.b16 %v1972
    %v2230 = vunpack.c.h.b16 %v1972
    %v2231 = vunpack.c.l.b16 %v1973
    %v2232 = vunpack.c.h.b16 %v1973
    %v2233 = vunpack.c.l.b16 %v1974
    %v2234 = vunpack.c.h.b16 %v1974
    %v2235 = vunpack.c.l.b16 %v1975
    %v2236 = vunpack.c.h.b16 %v1975
    %v2237 = vunpack.c.l.b16 %v1976
    %v2238 = vunpack.c.h.b16 %v1976
    %v2239 = vunpack.c.l.b16 %v1977
    %v2240 = vunpack.c.h.b16 %v1977
    %v2241 = vunpack.c.l.b16 %v1978
    %v2242 = vunpack.c.h.b16 %v1978
    %v2243 = vunpack.c.l.b16 %v1979
    %v2244 = vunpack.c.h.b16 %v1979
    %v2245 = vunpack.c.l.b16 %v1980
    %v2246 = vunpack.c.h.b16 %v1980
    %v2247 = vunpack.c.l.b16 %v1981
    %v2248 = vunpack.c.h.b16 %v1981
    %v2249 = vunpack.c.l.b16 %v1982
    %v2250 = vunpack.c.h.b16 %v1982
    %v2251 = vunpack.c.l.b16 %v1983
    %v2252 = vunpack.c.h.b16 %v1983
    %v2253 = vunpack.c.l.b16 %v1984
    %v2254 = vunpack.c.h.b16 %v1984
    %v2255 = vunpack.c.l.b16 %v1985
    %v2256 = vunpack.c.h.b16 %v1985
    %v2257 = vunpack.c.l.b16 %v1986
    %v2258 = vunpack.c.h.b16 %v1986
    %v2259 = vunpack.c.l.b16 %v1987
    %v2260 = vunpack.c.h.b16 %v1987
    %v2261 = vunpack.c.l.b16 %v1988
    %v2262 = vunpack.c.h.b16 %v1988
    %v2263 = vunpack.c.l.b16 %v1989
    %v2264 = vunpack.c.h.b16 %v1989
    %v2265 = vunpack.c.l.b16 %v1990
    %v2266 = vunpack.c.h.b16 %v1990
    %v2267 = vunpack.c.l.b16 %v1991
    %v2268 = vunpack.c.h.b16 %v1991
    %v2269 = vunpack.c.l.b16 %v1992
    %v2270 = vunpack.c.h.b16 %v1992
    %v2271 = vunpack.c.l.b16 %v1993
    %v2272 = vunpack.c.h.b16 %v1993
    %v2273 = vunpack.c.l.b16 %v1994
    %v2274 = vunpack.c.h.b16 %v1994
    %v2275 = vunpack.c.l.b16 %v1995
    %v2276 = vunpack.c.h.b16 %v1995
    %v2277 = vunpack.c.l.b16 %v1996
    %v2278 = vunpack.c.h.b16 %v1996
    %v2279 = vunpack.c.l.b16 %v1997
    %v2280 = vunpack.c.h.b16 %v1997
    %v2281 = vunpack.c.l.b16 %v1998
    %v2282 = vunpack.c.h.b16 %v1998
    %v2283 = vunpack.c.l.b16 %v1999
    %v2284 = vunpack.c.h.b16 %v1999
    %v2285 = vunpack.c.l.b16 %v2000
    %v2286 = vunpack.c.h.b16 %v2000
    %v2287 = vunpack.c.l.b16 %v2001
    %v2288 = vunpack.c.h.b16 %v2001
    %v2289 = vunpack.c.l.b16 %v2002
    %v2290 = vunpack.c.h.b16 %v2002
    %v2291 = vpack.c.b16 %v2103, %v2099
    %v2292 = vpack.c.b16 %v2104, %v2100
    %v2293 = vpack.c.b16 %v2105, %v2101
    %v2294 = vpack.c.b16 %v2106, %v2102
    %v2295 = vpack.c.b16 %v2111, %v2107
    %v2296 = vpack.c.b16 %v2112, %v2108
    %v2297 = vpack.c.b16 %v2113, %v2109
    %v2298 = vpack.c.b16 %v2114, %v2110
    %v2299 = vpack.c.b16 %v2119, %v2115
    %v2300 = vpack.c.b16 %v2120, %v2116
    %v2301 = vpack.c.b16 %v2121, %v2117
    %v2302 = vpack.c.b16 %v2122, %v2118
    %v2303 = vpack.c.b16 %v2127, %v2123
    %v2304 = vpack.c.b16 %v2128, %v2124
    %v2305 = vpack.c.b16 %v2129, %v2125
    %v2306 = vpack.c.b16 %v2130, %v2126
    %v2307 = vpack.c.b16 %v2135, %v2131
    %v2308 = vpack.c.b16 %v2136, %v2132
    %v2309 = vpack.c.b16 %v2137, %v2133
    %v2310 = vpack.c.b16 %v2138, %v2134
    %v2311 = vpack.c.b16 %v2143, %v2139
    %v2312 = vpack.c.b16 %v2144, %v2140
    %v2313 = vpack.c.b16 %v2145, %v2141
    %v2314 = vpack.c.b16 %v2146, %v2142
    %v2315 = vpack.c.b16 %v2151, %v2147
    %v2316 = vpack.c.b16 %v2152, %v2148
    %v2317 = vpack.c.b16 %v2153, %v2149
    %v2318 = vpack.c.b16 %v2154, %v2150
    %v2319 = vpack.c.b16 %v2159, %v2155
    %v2320 = vpack.c.b16 %v2160, %v2156
    %v2321 = vpack.c.b16 %v2161, %v2157
    %v2322 = vpack.c.b16 %v2162, %v2158
    %v2323 = vpack.c.b16 %v2167, %v2163
    %v2324 = vpack.c.b16 %v2168, %v2164
    %v2325 = vpack.c.b16 %v2169, %v2165
    %v2326 = vpack.c.b16 %v2170, %v2166
    %v2327 = vpack.c.b16 %v2175, %v2171
    %v2328 = vpack.c.b16 %v2176, %v2172
    %v2329 = vpack.c.b16 %v2177, %v2173
    %v2330 = vpack.c.b16 %v2178, %v2174
    %v2331 = vpack.c.b16 %v2183, %v2179
    %v2332 = vpack.c.b16 %v2184, %v2180
    %v2333 = vpack.c.b16 %v2185, %v2181
    %v2334 = vpack.c.b16 %v2186, %v2182
    %v2335 = vpack.c.b16 %v2191, %v2187
    %v2336 = vpack.c.b16 %v2192, %v2188
    %v2337 = vpack.c.b16 %v2193, %v2189
    %v2338 = vpack.c.b16 %v2194, %v2190
    %v2339 = vpack.c.b16 %v2199, %v2195
    %v2340 = vpack.c.b16 %v2200, %v2196
    %v2341 = vpack.c.b16 %v2201, %v2197
    %v2342 = vpack.c.b16 %v2202, %v2198
    %v2343 = vpack.c.b16 %v2207, %v2203
    %v2344 = vpack.c.b16 %v2208, %v2204
    %v2345 = vpack.c.b16 %v2209, %v2205
    %v2346 = vpack.c.b16 %v2210, %v2206
    %v2347 = vpack.c.b16 %v2215, %v2211
    %v2348 = vpack.c.b16 %v2216, %v2212
    %v2349 = vpack.c.b16 %v2217, %v2213
    %v2350 = vpack.c.b16 %v2218, %v2214
    %v2351 = vpack.c.b16 %v2223, %v2219
    %v2352 = vpack.c.b16 %v2224, %v2220
    %v2353 = vpack.c.b16 %v2225, %v2221
    %v2354 = vpack.c.b16 %v2226, %v2222
    %v2355 = vpack.c.b16 %v2231, %v2227
    %v2356 = vpack.c.b16 %v2232, %v2228
    %v2357 = vpack.c.b16 %v2233, %v2229
    %v2358 = vpack.c.b16 %v2234, %v2230
    %v2359 = vpack.c.b16 %v2239, %v2235
    %v2360 = vpack.c.b16 %v2240, %v2236
    %v2361 = vpack.c.b16 %v2241, %v2237
    %v2362 = vpack.c.b16 %v2242, %v2238
    %v2363 = vpack.c.b16 %v2247, %v2243
    %v2364 = vpack.c.b16 %v2248, %v2244
    %v2365 = vpack.c.b16 %v2249, %v2245
    %v2366 = vpack.c.b16 %v2250, %v2246
    %v2367 = vpack.c.b16 %v2255, %v2251
    %v2368 = vpack.c.b16 %v2256, %v2252
    %v2369 = vpack.c.b16 %v2257, %v2253
    %v2370 = vpack.c.b16 %v2258, %v2254
    %v2371 = vpack.c.b16 %v2263, %v2259
    %v2372 = vpack.c.b16 %v2264, %v2260
    %v2373 = vpack.c.b16 %v2265, %v2261
    %v2374 = vpack.c.b16 %v2266, %v2262
    %v2375 = vpack.c.b16 %v2271, %v2267
    %v2376 = vpack.c.b16 %v2272, %v2268
    %v2377 = vpack.c.b16 %v2273, %v2269
    %v2378 = vpack.c.b16 %v2274, %v2270
    %v2379 = vpack.c.b16 %v2279, %v2275
    %v2380 = vpack.c.b16 %v2280, %v2276
    %v2381 = vpack.c.b16 %v2281, %v2277
    %v2382 = vpack.c.b16 %v2282, %v2278
    %v2383 = vpack.c.b16 %v2287, %v2283
    %v2384 = vpack.c.b16 %v2288, %v2284
    %v2385 = vpack.c.b16 %v2289, %v2285
    %v2386 = vpack.c.b16 %v2290, %v2286
    %2483 = vmatpush.bf16.msra.mxu0 %v2319
    %2484 = vmatpush.bf16.msra.mxu0 %v2315
    %2485 = vmatpush.bf16.msra.mxu0 %v2311
    %2486 = vmatpush.bf16.msra.mxu0 %v2307
    %2487 = vmatpush.bf16.msra.mxu0 %v2303
    %2488 = vmatpush.bf16.msra.mxu0 %v2299
    %2489 = vmatpush.bf16.msra.mxu0 %v2295
    %2490 = vmatpush.bf16.msra.mxu0 %v2291
    %2491 = vmatmul.bf16.gmra.mxu0 %v1904
    %v2492 = vpop.f32.mrf.mxu0
    %v2493 = vadd.f32 0.0, %v2492
    %v2494 = vpop.f32.mrf.mxu0
    %v2495 = vadd.f32 0.0, %v2494
    %2496 = vdwg.mxu0
    %2497 = vmatpush.bf16.msra.mxu0 %v2351
    %2498 = vmatpush.bf16.msra.mxu0 %v2347
    %2499 = vmatpush.bf16.msra.mxu0 %v2343
    %2500 = vmatpush.bf16.msra.mxu0 %v2339
    %2501 = vmatpush.bf16.msra.mxu0 %v2335
    %2502 = vmatpush.bf16.msra.mxu0 %v2331
    %2503 = vmatpush.bf16.msra.mxu0 %v2327
    %2504 = vmatpush.bf16.msra.mxu0 %v2323
    %2505 = vmatmul.bf16.gmra.mxu0 %v1905
    %v2506 = vpop.f32.mrf.mxu0
    %v2507 = vadd.f32 %v2493, %v2506
    %v2508 = vpop.f32.mrf.mxu0
    %v2509 = vadd.f32 %v2495, %v2508
    %2510 = vdwg.mxu0
    %2511 = vmatpush.bf16.msra.mxu0 %v2383
    %2512 = vmatpush.bf16.msra.mxu0 %v2379
    %2513 = vmatpush.bf16.msra.mxu0 %v2375
    %2514 = vmatpush.bf16.msra.mxu0 %v2371
    %2515 = vmatpush.bf16.msra.mxu0 %v2367
    %2516 = vmatpush.bf16.msra.mxu0 %v2363
    %2517 = vmatpush.bf16.msra.mxu0 %v2359
    %2518 = vmatpush.bf16.msra.mxu0 %v2355
    %2519 = vmatmul.bf16.gmra.mxu0 %v1906
    %v2520 = vpop.f32.mrf.mxu0
    %v2521 = vadd.f32 %v2507, %v2520
    %v2522 = vpop.f32.mrf.mxu0
    %v2523 = vadd.f32 %v2509, %v2522
    %2524 = vdwg.mxu0
    %2525 = vmatpush.bf16.msra.mxu0 %v2320
    %2526 = vmatpush.bf16.msra.mxu0 %v2316
    %2527 = vmatpush.bf16.msra.mxu0 %v2312
    %2528 = vmatpush.bf16.msra.mxu0 %v2308
    %2529 = vmatpush.bf16.msra.mxu0 %v2304
    %2530 = vmatpush.bf16.msra.mxu0 %v2300
    %2531 = vmatpush.bf16.msra.mxu0 %v2296
    %2532 = vmatpush.bf16.msra.mxu0 %v2292
    %2533 = vmatmul.bf16.gmra.mxu0 %v1904
    %v2534 = vpop.f32.mrf.mxu0
    %v2535 = vadd.f32 0.0, %v2534
    %v2536 = vpop.f32.mrf.mxu0
    %v2537 = vadd.f32 0.0, %v2536
    %2538 = vdwg.mxu0
    %2539 = vmatpush.bf16.msra.mxu0 %v2352
    %2540 = vmatpush.bf16.msra.mxu0 %v2348
    %2541 = vmatpush.bf16.msra.mxu0 %v2344
    %2542 = vmatpush.bf16.msra.mxu0 %v2340
    %2543 = vmatpush.bf16.msra.mxu0 %v2336
    %2544 = vmatpush.bf16.msra.mxu0 %v2332
    %2545 = vmatpush.bf16.msra.mxu0 %v2328
    %2546 = vmatpush.bf16.msra.mxu0 %v2324
    %2547 = vmatmul.bf16.gmra.mxu0 %v1905
    %v2548 = vpop.f32.mrf.mxu0
    %v2549 = vadd.f32 %v2535, %v2548
    %v2550 = vpop.f32.mrf.mxu0
    %v2551 = vadd.f32 %v2537, %v2550
    %2552 = vdwg.mxu0
    %2553 = vmatpush.bf16.msra.mxu0 %v2384
    %2554 = vmatpush.bf16.msra.mxu0 %v2380
    %2555 = vmatpush.bf16.msra.mxu0 %v2376
    %2556 = vmatpush.bf16.msra.mxu0 %v2372
    %2557 = vmatpush.bf16.msra.mxu0 %v2368
    %2558 = vmatpush.bf16.msra.mxu0 %v2364
    %2559 = vmatpush.bf16.msra.mxu0 %v2360
    %2560 = vmatpush.bf16.msra.mxu0 %v2356
    %2561 = vmatmul.bf16.gmra.mxu0 %v1906
    %v2562 = vpop.f32.mrf.mxu0
    %v2563 = vadd.f32 %v2549, %v2562
    %v2564 = vpop.f32.mrf.mxu0
    %v2565 = vadd.f32 %v2551, %v2564
    %2566 = vdwg.mxu0
    %2567 = vmatpush.bf16.msra.mxu0 %v2321
    %2568 = vmatpush.bf16.msra.mxu0 %v2317
    %2569 = vmatpush.bf16.msra.mxu0 %v2313
    %2570 = vmatpush.bf16.msra.mxu0 %v2309
    %2571 = vmatpush.bf16.msra.mxu0 %v2305
    %2572 = vmatpush.bf16.msra.mxu0 %v2301
    %2573 = vmatpush.bf16.msra.mxu0 %v2297
    %2574 = vmatpush.bf16.msra.mxu0 %v2293
    %2575 = vmatmul.bf16.gmra.mxu0 %v1904
    %v2576 = vpop.f32.mrf.mxu0
    %v2577 = vadd.f32 0.0, %v2576
    %v2578 = vpop.f32.mrf.mxu0
    %v2579 = vadd.f32 0.0, %v2578
    %2580 = vdwg.mxu0
    %2581 = vmatpush.bf16.msra.mxu0 %v2353
    %2582 = vmatpush.bf16.msra.mxu0 %v2349
    %2583 = vmatpush.bf16.msra.mxu0 %v2345
    %2584 = vmatpush.bf16.msra.mxu0 %v2341
    %2585 = vmatpush.bf16.msra.mxu0 %v2337
    %2586 = vmatpush.bf16.msra.mxu0 %v2333
    %2587 = vmatpush.bf16.msra.mxu0 %v2329
    %2588 = vmatpush.bf16.msra.mxu0 %v2325
    %2589 = vmatmul.bf16.gmra.mxu0 %v1905
    %v2590 = vpop.f32.mrf.mxu0
    %v2591 = vadd.f32 %v2577, %v2590
    %v2592 = vpop.f32.mrf.mxu0
    %v2593 = vadd.f32 %v2579, %v2592
    %2594 = vdwg.mxu0
    %2595 = vmatpush.bf16.msra.mxu0 %v2385
    %2596 = vmatpush.bf16.msra.mxu0 %v2381
    %2597 = vmatpush.bf16.msra.mxu0 %v2377
    %2598 = vmatpush.bf16.msra.mxu0 %v2373
    %2599 = vmatpush.bf16.msra.mxu0 %v2369
    %2600 = vmatpush.bf16.msra.mxu0 %v2365
    %2601 = vmatpush.bf16.msra.mxu0 %v2361
    %2602 = vmatpush.bf16.msra.mxu0 %v2357
    %2603 = vmatmul.bf16.gmra.mxu0 %v1906
    %v2604 = vpop.f32.mrf.mxu0
    %v2605 = vadd.f32 %v2591, %v2604
    %v2606 = vpop.f32.mrf.mxu0
    %v2607 = vadd.f32 %v2593, %v2606
    %2608 = vdwg.mxu0
    %2609 = vmatpush.bf16.msra.mxu0 %v2322
    %2610 = vmatpush.bf16.msra.mxu0 %v2318
    %2611 = vmatpush.bf16.msra.mxu0 %v2314
    %2612 = vmatpush.bf16.msra.mxu0 %v2310
    %2613 = vmatpush.bf16.msra.mxu0 %v2306
    %2614 = vmatpush.bf16.msra.mxu0 %v2302
    %2615 = vmatpush.bf16.msra.mxu0 %v2298
    %2616 = vmatpush.bf16.msra.mxu0 %v2294
    %2617 = vmatmul.bf16.gmra.mxu0 %v1904
    %v2618 = vpop.f32.mrf.mxu0
    %v2619 = vadd.f32 0.0, %v2618
    %v2620 = vpop.f32.mrf.mxu0
    %v2621 = vadd.f32 0.0, %v2620
    %2622 = vdwg.mxu0
    %2623 = vmatpush.bf16.msra.mxu0 %v2354
    %2624 = vmatpush.bf16.msra.mxu0 %v2350
    %2625 = vmatpush.bf16.msra.mxu0 %v2346
    %2626 = vmatpush.bf16.msra.mxu0 %v2342
    %2627 = vmatpush.bf16.msra.mxu0 %v2338
    %2628 = vmatpush.bf16.msra.mxu0 %v2334
    %2629 = vmatpush.bf16.msra.mxu0 %v2330
    %2630 = vmatpush.bf16.msra.mxu0 %v2326
    %2631 = vmatmul.bf16.gmra.mxu0 %v1905
    %v2632 = vpop.f32.mrf.mxu0
    %v2633 = vadd.f32 %v2619, %v2632
    %v2634 = vpop.f32.mrf.mxu0
    %v2635 = vadd.f32 %v2621, %v2634
    %2636 = vdwg.mxu0
    %2637 = vmatpush.bf16.msra.mxu0 %v2386
    %2638 = vmatpush.bf16.msra.mxu0 %v2382
    %2639 = vmatpush.bf16.msra.mxu0 %v2378
    %2640 = vmatpush.bf16.msra.mxu0 %v2374
    %2641 = vmatpush.bf16.msra.mxu0 %v2370
    %2642 = vmatpush.bf16.msra.mxu0 %v2366
    %2643 = vmatpush.bf16.msra.mxu0 %v2362
    %2644 = vmatpush.bf16.msra.mxu0 %v2358
    %2645 = vmatmul.bf16.gmra.mxu0 %v1906
    %v2646 = vpop.f32.mrf.mxu0
    %v2647 = vadd.f32 %v2633, %v2646
    %v2648 = vpop.f32.mrf.mxu0
    %v2649 = vadd.f32 %v2635, %v2648
    %2650 = vdwg.mxu0
    %v2651 = vadd.f32 %v1888, %v2647
    %v2652 = vadd.f32 %v1890, %v2649
    %v2653 = vadd.f32 %v995, %v2521
    %v2654 = vadd.f32 %v1065, %v2563
    %v2655 = vadd.f32 %v1135, %v2605
    %v2656 = vadd.f32 %v997, %v2523
    %v2657 = vadd.f32 %v1067, %v2565
    %v2658 = vadd.f32 %v1137, %v2607
    %v2659 = vmax.f32 %v2653, 0.0
    %v2660 = vmax.f32 %v2654, 0.0
    %v2661 = vmax.f32 %v2655, 0.0
    %v2662 = vmax.f32 %v2656, 0.0
    %v2663 = vmax.f32 %v2657, 0.0
    %v2664 = vmax.f32 %v2658, 0.0
    %v2665 = vpack.c.bf16 %v2662, %v2659
    %v2666 = vpack.c.bf16 %v2663, %v2660
    %v2667 = vpack.c.bf16 %v2664, %v2661
    %v2668 = vld [vmem:[#allocation7] sm:$0xf]
    %v2669 = vld [vmem:[#allocation7 + $0x4] sm:$0xf]
    %v2670 = vld [vmem:[#allocation7 + $0x8] sm:$0xf]
    %v2671 = vld [vmem:[#allocation7 + $0xc] sm:$0xf]
    %v2672 = vld [vmem:[#allocation7 + $0x10] sm:$0xf]
    %v2673 = vld [vmem:[#allocation7 + $0x14] sm:$0xf]
    %v2674 = vld [vmem:[#allocation7 + $0x18] sm:$0xf]
    %v2675 = vld [vmem:[#allocation7 + $0x1c] sm:$0xf]
    %v2676 = vld [vmem:[#allocation7 + $0x20] sm:$0xf]
    %v2677 = vld [vmem:[#allocation7 + $0x24] sm:$0xf]
    %v2678 = vld [vmem:[#allocation7 + $0x28] sm:$0xf]
    %v2679 = vld [vmem:[#allocation7 + $0x2c] sm:$0xf]
    %v2680 = vld [vmem:[#allocation7 + $0x30] sm:$0xf]
    %v2681 = vld [vmem:[#allocation7 + $0x34] sm:$0xf]
    %v2682 = vld [vmem:[#allocation7 + $0x38] sm:$0xf]
    %v2683 = vld [vmem:[#allocation7 + $0x3c] sm:$0xf]
    %v2684 = vld [vmem:[#allocation7 + $0x40] sm:$0xf]
    %v2685 = vld [vmem:[#allocation7 + $0x44] sm:$0xf]
    %v2686 = vld [vmem:[#allocation7 + $0x48] sm:$0xf]
    %v2687 = vld [vmem:[#allocation7 + $0x4c] sm:$0xf]
    %v2688 = vld [vmem:[#allocation7 + $0x50] sm:$0xf]
    %v2689 = vld [vmem:[#allocation7 + $0x54] sm:$0xf]
    %v2690 = vld [vmem:[#allocation7 + $0x58] sm:$0xf]
    %v2691 = vld [vmem:[#allocation7 + $0x5c] sm:$0xf]
    %v2692 = vld [vmem:[#allocation7 + $0x60] sm:$0xf]
    %v2693 = vld [vmem:[#allocation7 + $0x64] sm:$0xf]
    %v2694 = vld [vmem:[#allocation7 + $0x68] sm:$0xf]
    %v2695 = vld [vmem:[#allocation7 + $0x6c] sm:$0xf]
    %v2696 = vld [vmem:[#allocation7 + $0x70] sm:$0xf]
    %v2697 = vld [vmem:[#allocation7 + $0x74] sm:$0xf]
    %v2698 = vld [vmem:[#allocation7 + $0x78] sm:$0xf]
    %v2699 = vld [vmem:[#allocation7 + $0x7c] sm:$0xf]
    %v2700 = vld [vmem:[#allocation7 + $0x80] sm:$0xf]
    %v2701 = vld [vmem:[#allocation7 + $0x84] sm:$0xf]
    %v2702 = vld [vmem:[#allocation7 + $0x88] sm:$0xf]
    %v2703 = vld [vmem:[#allocation7 + $0x8c] sm:$0xf]
    %v2704 = vld [vmem:[#allocation7 + $0x90] sm:$0xf]
    %v2705 = vld [vmem:[#allocation7 + $0x94] sm:$0xf]
    %v2706 = vld [vmem:[#allocation7 + $0x98] sm:$0xf]
    %v2707 = vld [vmem:[#allocation7 + $0x9c] sm:$0xf]
    %v2708 = vld [vmem:[#allocation7 + $0xa0] sm:$0xf]
    %v2709 = vld [vmem:[#allocation7 + $0xa4] sm:$0xf]
    %v2710 = vld [vmem:[#allocation7 + $0xa8] sm:$0xf]
    %v2711 = vld [vmem:[#allocation7 + $0xac] sm:$0xf]
    %v2712 = vld [vmem:[#allocation7 + $0xb0] sm:$0xf]
    %v2713 = vld [vmem:[#allocation7 + $0xb4] sm:$0xf]
    %v2714 = vld [vmem:[#allocation7 + $0xb8] sm:$0xf]
    %v2715 = vld [vmem:[#allocation7 + $0xbc] sm:$0xf]
    %v2764 = vunpack.c.l.b16 %v2668
    %v2765 = vunpack.c.l.b16 %v2669
    %v2766 = vunpack.c.l.b16 %v2670
    %v2767 = vunpack.c.l.b16 %v2671
    %v2768 = vunpack.c.l.b16 %v2672
    %v2769 = vunpack.c.l.b16 %v2673
    %v2770 = vunpack.c.l.b16 %v2674
    %v2771 = vunpack.c.l.b16 %v2675
    %v2772 = vunpack.c.l.b16 %v2676
    %v2773 = vunpack.c.l.b16 %v2677
    %v2774 = vunpack.c.l.b16 %v2678
    %v2775 = vunpack.c.l.b16 %v2679
    %v2776 = vunpack.c.l.b16 %v2680
    %v2777 = vunpack.c.l.b16 %v2681
    %v2778 = vunpack.c.l.b16 %v2682
    %v2779 = vunpack.c.l.b16 %v2683
    %v2780 = vunpack.c.l.b16 %v2684
    %v2781 = vunpack.c.l.b16 %v2685
    %v2782 = vunpack.c.l.b16 %v2686
    %v2783 = vunpack.c.l.b16 %v2687
    %v2784 = vunpack.c.l.b16 %v2688
    %v2785 = vunpack.c.l.b16 %v2689
    %v2786 = vunpack.c.l.b16 %v2690
    %v2787 = vunpack.c.l.b16 %v2691
    %v2788 = vunpack.c.l.b16 %v2692
    %v2789 = vunpack.c.l.b16 %v2693
    %v2790 = vunpack.c.l.b16 %v2694
    %v2791 = vunpack.c.l.b16 %v2695
    %v2792 = vunpack.c.l.b16 %v2696
    %v2793 = vunpack.c.l.b16 %v2697
    %v2794 = vunpack.c.l.b16 %v2698
    %v2795 = vunpack.c.l.b16 %v2699
    %v2796 = vunpack.c.l.b16 %v2700
    %v2797 = vunpack.c.l.b16 %v2701
    %v2798 = vunpack.c.l.b16 %v2702
    %v2799 = vunpack.c.l.b16 %v2703
    %v2800 = vunpack.c.l.b16 %v2704
    %v2801 = vunpack.c.l.b16 %v2705
    %v2802 = vunpack.c.l.b16 %v2706
    %v2803 = vunpack.c.l.b16 %v2707
    %v2804 = vunpack.c.l.b16 %v2708
    %v2805 = vunpack.c.l.b16 %v2709
    %v2806 = vunpack.c.l.b16 %v2710
    %v2807 = vunpack.c.l.b16 %v2711
    %v2808 = vunpack.c.l.b16 %v2712
    %v2809 = vunpack.c.l.b16 %v2713
    %v2810 = vunpack.c.l.b16 %v2714
    %v2811 = vunpack.c.l.b16 %v2715
    %v2812 = vpack.c.b16 %v2765, %v2764
    %v2813 = vpack.c.b16 %v2767, %v2766
    %v2814 = vpack.c.b16 %v2769, %v2768
    %v2815 = vpack.c.b16 %v2771, %v2770
    %v2816 = vpack.c.b16 %v2773, %v2772
    %v2817 = vpack.c.b16 %v2775, %v2774
    %v2818 = vpack.c.b16 %v2777, %v2776
    %v2819 = vpack.c.b16 %v2779, %v2778
    %v2820 = vpack.c.b16 %v2781, %v2780
    %v2821 = vpack.c.b16 %v2783, %v2782
    %v2822 = vpack.c.b16 %v2785, %v2784
    %v2823 = vpack.c.b16 %v2787, %v2786
    %v2824 = vpack.c.b16 %v2789, %v2788
    %v2825 = vpack.c.b16 %v2791, %v2790
    %v2826 = vpack.c.b16 %v2793, %v2792
    %v2827 = vpack.c.b16 %v2795, %v2794
    %v2828 = vpack.c.b16 %v2797, %v2796
    %v2829 = vpack.c.b16 %v2799, %v2798
    %v2830 = vpack.c.b16 %v2801, %v2800
    %v2831 = vpack.c.b16 %v2803, %v2802
    %v2832 = vpack.c.b16 %v2805, %v2804
    %v2833 = vpack.c.b16 %v2807, %v2806
    %v2834 = vpack.c.b16 %v2809, %v2808
    %v2835 = vpack.c.b16 %v2811, %v2810
    %2860 = vmatpush.bf16.msra.mxu0 %v2819
    %2861 = vmatpush.bf16.msra.mxu0 %v2818
    %2862 = vmatpush.bf16.msra.mxu0 %v2817
    %2863 = vmatpush.bf16.msra.mxu0 %v2816
    %2864 = vmatpush.bf16.msra.mxu0 %v2815
    %2865 = vmatpush.bf16.msra.mxu0 %v2814
    %2866 = vmatpush.bf16.msra.mxu0 %v2813
    %2867 = vmatpush.bf16.msra.mxu0 %v2812
    %2868 = vmatmul.bf16.gmra.mxu0 %v2665
    %v2869 = vpop.f32.mrf.mxu0
    %v2870 = vadd.f32 0.0, %v2869
    %v2871 = vpop.f32.mrf.mxu0
    %v2872 = vadd.f32 0.0, %v2871
    %2873 = vdwg.mxu0
    %2874 = vmatpush.bf16.msra.mxu0 %v2827
    %2875 = vmatpush.bf16.msra.mxu0 %v2826
    %2876 = vmatpush.bf16.msra.mxu0 %v2825
    %2877 = vmatpush.bf16.msra.mxu0 %v2824
    %2878 = vmatpush.bf16.msra.mxu0 %v2823
    %2879 = vmatpush.bf16.msra.mxu0 %v2822
    %2880 = vmatpush.bf16.msra.mxu0 %v2821
    %2881 = vmatpush.bf16.msra.mxu0 %v2820
    %2882 = vmatmul.bf16.gmra.mxu0 %v2666
    %v2883 = vpop.f32.mrf.mxu0
    %v2884 = vadd.f32 %v2870, %v2883
    %v2885 = vpop.f32.mrf.mxu0
    %v2886 = vadd.f32 %v2872, %v2885
    %2887 = vdwg.mxu0
    %2888 = vmatpush.bf16.msra.mxu0 %v2835
    %2889 = vmatpush.bf16.msra.mxu0 %v2834
    %2890 = vmatpush.bf16.msra.mxu0 %v2833
    %2891 = vmatpush.bf16.msra.mxu0 %v2832
    %2892 = vmatpush.bf16.msra.mxu0 %v2831
    %2893 = vmatpush.bf16.msra.mxu0 %v2830
    %2894 = vmatpush.bf16.msra.mxu0 %v2829
    %2895 = vmatpush.bf16.msra.mxu0 %v2828
    %2896 = vmatmul.bf16.gmra.mxu0 %v2667
    %v2897 = vpop.f32.mrf.mxu0
    %v2898 = vadd.f32 %v2884, %v2897
    %v2899 = vpop.f32.mrf.mxu0
    %v2900 = vadd.f32 %v2886, %v2899
    %2901 = vdwg.mxu0
    %v2902 = vadd.f32 %v2651, %v2898
    %v2903 = vadd.f32 %v2652, %v2900
    %v2904 = vld [vmem:[%s6] sm:$0x1]
    %v2906 = vperm.slane %v2904, 0
    %v2908 = vadd.f32 %v2902, %v2906
    %v2909 = vadd.f32 %v2903, %v2906
    %2910 = vst [vmem:[%s7] sm:$0xff] %v2908
    %2911 = vst [vmem:[%s7 + $0x8] sm:$0xff] %v2909
    // Predicated region
    $region46: #{netrnn_forward.1} parent=1 // pred_check
      _
    $region47: #{netrnn_forward.1} parent=1 // pred_check_branch
      %2913 = sbr.rel (0) target = $region49
    $region48: #{netrnn_forward.1} parent=1 // pred_region
      _
    $region49: #{netrnn_forward.1} parent=1 // pred_fallthru
      _
    // Predicated region
    $region50: #{netrnn_forward.1} parent=1 // pred_check
      _
    $region51: #{netrnn_forward.1} parent=1 // pred_check_branch
      %2915 = sbr.rel (0) target = $region53
    $region52: #{netrnn_forward.1} parent=1 // pred_region
      _
    $region53: #{netrnn_forward.1} parent=1 // pred_fallthru
      _
    %2916 = vsyncpa [#allocation3], 1
    %2917 = vsyncpa [#allocation5], 1
    %2918 = vsyncpa [#allocation8], 1

</llo_original>
